<compile_context>
chip_gen: v6e
topology: v6e:2x2x1
jax: 0.10.0
libtpu: 0.0.40
codegen_flags: <defaults>
</compile_context>

<pallas_src>
import functools

import jax
import jax.numpy as jnp
import numpy as np
from jax.experimental import pallas as pl
from jax.experimental.pallas import tpu as pltpu

NEG_SLOPE = 0.2      # leakyrelu negative_slope from act_args
BN_EPS = 1e-5        # BatchNorm eps; eval-mode, weight=1, bias=0, running mean/var = 0/1


# ---------------------------------------------------------------------------
# Fused per-batch kernel: ball query + EdgeConv blocks + fusion block
# ---------------------------------------------------------------------------
def _ball_dgcnn_kernel(pts_ref, prow_ref, wij_ref, b_ref, sc_ref, sh_ref,
                       wf_ref, scf_ref, shf_ref, feat_ref, idx_ref, gmat_ref, *,
                       n_pts, k, radius, neg_slope):
    f32 = jnp.float32
    bf16 = jnp.bfloat16
    N = n_pts
    n_gc, P, _ = wij_ref.shape

    x0 = pts_ref[...]                                             # (N, P) coords in lanes 0..2

    # ---------------- ball query: exact per-coordinate pairwise distances ------------
    d2 = None
    for c in range(3):
        diff = x0[:, c:c + 1] - prow_ref[c]                       # (N,1)-(1,N) -> (N,N)
        sq = diff * diff
        d2 = sq if d2 is None else d2 + sq
    hit = d2 < radius * radius                                    # (N, N) bool
    count = jnp.sum(hit.astype(f32), axis=1, keepdims=True)       # (N, 1), >= 1 (self-hit)

    # k-step first-remaining-hit selection (pointnet2 ball_query: first k hits in index
    # order, empty slots padded with the first hit).  One lane-min + compare per slot;
    # no prefix matmul / cumsum.  Each slot's one-hot block goes straight into the bf16
    # gather scratch (reused by every EdgeConv block below); the neighbor index is the
    # lane-min itself.
    colf = jax.lax.broadcasted_iota(jnp.int32, (N, N), 1).astype(f32)
    bigv = float(N)
    remaining = jnp.where(hit, colf, bigv)                        # col index where hit
    slot_pos = jax.lax.broadcasted_iota(jnp.int32, (1, k), 1).astype(f32)
    sel0 = None
    idx0 = None
    idx_acc = jnp.zeros((N, k), f32)
    for s in range(k):
        mcol = jnp.min(remaining, axis=1, keepdims=True)          # (N,1): s-th hit col (or bigv)
        sel_b = colf == mcol                                      # (N,N) one-hot (all-0 if done)
        sel_f = jnp.where(sel_b, 1.0, 0.0)
        if s == 0:
            sel0, idx0 = sel_f, mcol                              # first hit (always exists)
            g_s, idx_s = sel_f, mcol
        else:
            has_s = count > (s + 0.5)
            g_s = jnp.where(has_s, sel_f, sel0)
            idx_s = jnp.where(has_s, mcol, idx0)
        gmat_ref[s * N:(s + 1) * N, :] = g_s.astype(bf16)
        idx_acc = idx_acc + idx_s * jnp.where(slot_pos == float(s), 1.0, 0.0)
        remaining = jnp.where(sel_b, bigv, remaining)             # drop this hit
    idx_ref[...] = idx_acc.astype(jnp.int32)
    gmat = gmat_ref[...]                                          # (k*N, N) bf16, reused below

    # ---------------- head + backbone EdgeConv blocks (channel padded to P lanes) ------
    x = x0
    feat_parts = []
    for blk in range(n_gc):
        # One packed matmul yields both halves: z = [x @ Wi | x @ Wj].
        z = jnp.dot(x, wij_ref[blk], preferred_element_type=f32)  # (N, 2P)
        t_i = z[:, :P] + b_ref[blk]                               # (N, P)
        # Reassociated gather: transform first, then gather (k x fewer weight FLOPs).
        xjw = jnp.dot(gmat, z[:, P:].astype(bf16),
                      preferred_element_type=f32)                 # (k*N, P)
        sc = sc_ref[blk]
        sh = sh_ref[blk]
        y = None
        for s in range(k):                                        # cheap VPU work, k static
            pre = t_i + xjw[s * N:(s + 1) * N, :]
            act = jnp.where(pre >= 0, pre, neg_slope * pre)
            v = act * sc + sh                                     # eval BatchNorm
            y = v if y is None else jnp.maximum(y, v)             # max over neighbors
        feat_parts.append(y)
        x = y

    # ---------------- fusion 1x1 conv block on the lane-dense concat -------------------
    cat = jnp.concatenate(feat_parts, axis=-1)                    # (N, n_gc*P) = 128 lanes
    pre = jnp.dot(cat, wf_ref[...], preferred_element_type=f32)   # (N, E)
    act = jnp.where(pre >= 0, pre, neg_slope * pre)
    feat_ref[...] = act * scf_ref[...] + shf_ref[...]             # single slab store


# ---------------------------------------------------------------------------
# Wrapper
# ---------------------------------------------------------------------------
def ball_dgcnn_forward(pts, packed, *, k, radius):
    """pts: (B, N, 3). Returns ((B, embed_dim, N) features, (B, N, k) neighbor idx)."""
    B, N, _ = pts.shape
    wij, bb, sc, sh, wf, scf, shf = (packed[n] for n in
                                     ("wij", "b", "sc", "sh", "wf", "scf", "shf"))
    NB, P, _ = wij.shape
    E = wf.shape[-1]

    pts_f = pts.astype(jnp.float32)
    pts_pad = jnp.concatenate([pts_f, jnp.zeros((B, N, P - 3), jnp.float32)], axis=-1)
    prow = jnp.transpose(pts_f, (0, 2, 1))[:, :, None, :]          # (B, 3, 1, N)

    def resident(a):   # constant index_map -> slab stays VMEM-resident across grid steps
        nd = a.ndim
        return pl.BlockSpec(a.shape, lambda b, _nd=nd: (0,) * _nd)

    kernel = functools.partial(_ball_dgcnn_kernel, n_pts=N, k=k, radius=radius,
                               neg_slope=NEG_SLOPE)
    feat, idx = pl.pallas_call(
        kernel,
        grid=(B,),
        in_specs=[pl.BlockSpec((None, N, P), lambda b: (b, 0, 0)),
                  pl.BlockSpec((None, 3, 1, N), lambda b: (b, 0, 0, 0)),
                  resident(wij), resident(bb), resident(sc), resident(sh),
                  resident(wf), resident(scf), resident(shf)],
        out_specs=[pl.BlockSpec((None, N, E), lambda b: (b, 0, 0)),
                   pl.BlockSpec((None, N, k), lambda b: (b, 0, 0))],
        out_shape=[jax.ShapeDtypeStruct((B, N, E), jnp.float32),
                   jax.ShapeDtypeStruct((B, N, k), jnp.int32)],
        scratch_shapes=[pltpu.VMEM((k * N, N), jnp.bfloat16)],
        compiler_params=pltpu.CompilerParams(
            dimension_semantics=("parallel",),
            vmem_limit_bytes=64 * 1024 * 1024),
    )(pts_pad, prow, wij, bb, sc, sh, wf, scf, shf)
    return jnp.transpose(feat, (0, 2, 1)), idx                    # (B, embed_dim, N)


# ---------------------------------------------------------------------------
# Main
# ---------------------------------------------------------------------------
if __name__ == "__main__":
    # Small config consistent with BallDGCNN(in_channels=3, channels=8, embed_dim=32,
    # n_blocks=5, k=4, radius=0.4).
    B, N, K_NEIGH = 2, 16, 4
    IN_CH, CH, EMBED, N_BLOCKS = 3, 8, 32, 5
    RADIUS = 0.4

    key = jax.random.PRNGKey(0)
    k_pts, k_w = jax.random.split(key)
    pts = jax.random.uniform(k_pts, (B, N, 3), jnp.float32)

    # Channel plan exactly as in __init__.
    gc_io = [(IN_CH, CH)]
    out_channels = [CH]
    in_c, c = CH, CH
    for _ in range(N_BLOCKS - 2):
        gc_io.append((in_c, c))
        out_channels.append(c)
        in_c = c
        c *= 2
    fusion_dims = int(sum(out_channels))              # 8 + 8 + 16 + 32 = 64
    NB = len(gc_io)                                   # 4 graph-conv layers
    P = max(co for _, co in gc_io)                    # padded per-block lane width (32)

    # Deterministic synthetic init: kaiming-normal conv weights, zero bias,
    # eval-mode BatchNorm (weight=1, bias=0, running mean/var = 0/1).
    bn_scale = float(1.0 / np.sqrt(1.0 + BN_EPS))
    keys = jax.random.split(k_w, NB + 1)
    graph_params = []
    for (cin, cout), kk in zip(gc_io, keys[:-1]):
        W = jax.random.normal(kk, (cout, 2 * cin), jnp.float32) * np.sqrt(2.0 / (2 * cin))
        W1, W2 = W[:, :cin], W[:, cin:]               # edge feature = cat[x_i, x_j - x_i]
        graph_params.append(dict(
            w_i=jnp.transpose(W1 - W2),               # (Cin, Cout)
            w_j=jnp.transpose(W2),                    # (Cin, Cout)
            scale=jnp.full((1, cout), bn_scale, jnp.float32),
            shift=jnp.zeros((1, cout), jnp.float32)))
    Wf_raw = jax.random.normal(keys[-1], (EMBED, fusion_dims), jnp.float32) * np.sqrt(
        2.0 / fusion_dims)
    wf_t = jnp.transpose(Wf_raw)                      # (fusion_dims, EMBED)

    # ---- pack parameters into channel-padded slabs, resident in VMEM across the grid --
    wij_s = np.zeros((NB, P, 2 * P), np.float32)      # [Wi | Wj] packed per block
    b_s = np.zeros((NB, 1, P), np.float32)            # conv bias: zero-initialized
    sc_s = np.zeros((NB, 1, P), np.float32)
    sh_s = np.zeros((NB, 1, P), np.float32)
    for i, ((cin, cout), p) in enumerate(zip(gc_io, graph_params)):
        wij_s[i, :cin, :cout] = np.asarray(p["w_i"])
        wij_s[i, :cin, P:P + cout] = np.asarray(p["w_j"])
        sc_s[i, 0, :cout] = bn_scale
    wf_s = np.zeros((NB * P, EMBED), np.float32)      # fusion weight, rows scattered to the
    off = 0                                           # padded concat layout
    for i, (_, cout) in enumerate(gc_io):
        wf_s[i * P:i * P + cout, :] = np.asarray(wf_t)[off:off + cout, :]
        off += cout
    packed = dict(
        wij=jnp.asarray(wij_s), b=jnp.asarray(b_s), sc=jnp.asarray(sc_s),
        sh=jnp.asarray(sh_s), wf=jnp.asarray(wf_s),
        scf=jnp.full((1, EMBED), bn_scale, jnp.float32),
        shf=jnp.zeros((1, EMBED), jnp.float32))

    out, idx = ball_dgcnn_forward(pts, packed, k=K_NEIGH, radius=RADIUS)
    out = jax.block_until_ready(out)
    assert out.shape == (B, EMBED, N) and out.dtype == jnp.float32
    assert idx.shape == (B, N, K_NEIGH) and idx.dtype == jnp.int32

    # ------------------ pure-JAX reference (ball query + EdgeConv + fusion) ------------
    def leaky(v):
        return jnp.where(v >= 0, v, NEG_SLOPE * v)

    def ref_ball_query(p):                            # (N, 3) -> (N, k)
        d2 = None
        for cc in range(3):
            diff = p[:, cc:cc + 1] - p[:, cc][None, :]
            sq = diff * diff
            d2 = sq if d2 is None else d2 + sq
        hitm = d2 < RADIUS * RADIUS
        hf = hitm.astype(jnp.int32)
        rank = jnp.cumsum(hf, axis=1) - hf
        cnt = jnp.sum(hf, axis=1)
        cols = jnp.arange(N, dtype=jnp.int32)
        first = jnp.argmax(hitm, axis=1).astype(jnp.int32)
        slots = []
        for s in range(K_NEIGH):
            sel = hitm & (rank == s)
            val = jnp.sum(jnp.where(sel, cols[None, :], 0), axis=1)
            slots.append(jnp.where(cnt > s, val, first))
        return jnp.stack(slots, axis=1)

    ref_idx = jax.vmap(ref_ball_query)(pts)
    np.testing.assert_array_equal(np.asarray(idx), np.asarray(ref_idx))

    def ref_gc(x, nbr, p):
        x_j = jax.vmap(lambda xb, ib: xb[ib])(x, nbr)                      # (B,N,k,Cin)
        t_i = jnp.einsum('bnc,co->bno', x, p["w_i"], precision='highest')
        t_j = jnp.einsum('bnkc,co->bnko', x_j, p["w_j"], precision='highest')
        y = leaky(t_i[:, :, None, :] + t_j) * p["scale"] + p["shift"]
        return jnp.max(y, axis=2)

    xr = pts
    rfeats = []
    for p in graph_params:
        xr = ref_gc(xr, ref_idx, p)
        rfeats.append(xr)
    rcat = jnp.concatenate(rfeats, axis=-1)
    rpre = jnp.einsum('bnc,ce->bne', rcat, wf_t, precision='highest')
    rout = jnp.transpose(leaky(rpre) * bn_scale, (0, 2, 1))
    # bf16 is used only for the one-hot gather operand + gathered features (f32 accum),
    # so the only error source is bf16 rounding of per-block neighbor features.
    np.testing.assert_allclose(np.asarray(out), np.asarray(rout), rtol=3e-2, atol=3e-2)

    print("KERNEL_OK")
</pallas_src>

<mosaic_0001>
module attributes {stable_mosaic.version = 11 : i64} {
  func.func @_ball_dgcnn_kernel(%arg0: i32, %arg1: memref<1x16x32xf32, #tpu.memory_space<vmem>>, %arg2: memref<1x3x1x16xf32, #tpu.memory_space<vmem>>, %arg3: memref<4x32x64xf32, #tpu.memory_space<vmem>>, %arg4: memref<4x1x32xf32, #tpu.memory_space<vmem>>, %arg5: memref<4x1x32xf32, #tpu.memory_space<vmem>>, %arg6: memref<4x1x32xf32, #tpu.memory_space<vmem>>, %arg7: memref<128x32xf32, #tpu.memory_space<vmem>>, %arg8: memref<1x32xf32, #tpu.memory_space<vmem>>, %arg9: memref<1x32xf32, #tpu.memory_space<vmem>>, %arg10: memref<1x16x32xf32, #tpu.memory_space<vmem>>, %arg11: memref<1x16x4xi32, #tpu.memory_space<vmem>>, %arg12: memref<64x16xbf16, #tpu.memory_space<vmem>>) attributes {dimension_semantics = [#tpu.dimension_semantics<parallel>], iteration_bounds = array<i64: 2>, scalar_prefetch = 0 : i64, scratch_operands = 1 : i64, tpu.core_type = #tpu.core_type<tc>, window_params = [{transform_indices = @transform_0, window_bounds = array<i64: 1, 16, 32>}, {transform_indices = @transform_1, window_bounds = array<i64: 1, 3, 1, 16>}, {pipeline_mode = #tpu.pipeline_mode<synchronous>, transform_indices = @transform_2, window_bounds = array<i64: 4, 32, 64>}, {pipeline_mode = #tpu.pipeline_mode<synchronous>, transform_indices = @transform_3, window_bounds = array<i64: 4, 1, 32>}, {pipeline_mode = #tpu.pipeline_mode<synchronous>, transform_indices = @transform_4, window_bounds = array<i64: 4, 1, 32>}, {pipeline_mode = #tpu.pipeline_mode<synchronous>, transform_indices = @transform_5, window_bounds = array<i64: 4, 1, 32>}, {pipeline_mode = #tpu.pipeline_mode<synchronous>, transform_indices = @transform_6, window_bounds = array<i64: 128, 32>}, {pipeline_mode = #tpu.pipeline_mode<synchronous>, transform_indices = @transform_7, window_bounds = array<i64: 1, 32>}, {pipeline_mode = #tpu.pipeline_mode<synchronous>, transform_indices = @transform_8, window_bounds = array<i64: 1, 32>}, {transform_indices = @transform_9, window_bounds = array<i64: 1, 16, 32>}, {transform_indices = @transform_10, window_bounds = array<i64: 1, 16, 4>}]} {
    %c0 = arith.constant 0 : index
    %c0_0 = arith.constant 0 : index
    %c0_1 = arith.constant 0 : index
    %0 = vector.load %arg1[%c0, %c0_0, %c0_1] : memref<1x16x32xf32, #tpu.memory_space<vmem>>, vector<1x16x32xf32>
    %1 = vector.shape_cast %0 : vector<1x16x32xf32> to vector<16x32xf32>
    %2 = vector.extract_strided_slice %1 {offsets = [0, 0], sizes = [16, 1], strides = [1, 1]} : vector<16x32xf32> to vector<16x1xf32>
    %c0_2 = arith.constant 0 : index
    %c0_3 = arith.constant 0 : index
    %c0_4 = arith.constant 0 : index
    %c0_5 = arith.constant 0 : index
    %3 = vector.load %arg2[%c0_2, %c0_3, %c0_4, %c0_5] : memref<1x3x1x16xf32, #tpu.memory_space<vmem>>, vector<1x1x1x16xf32>
    %4 = vector.shape_cast %3 : vector<1x1x1x16xf32> to vector<1x16xf32>
    %5 = vector.broadcast %2 : vector<16x1xf32> to vector<16x16xf32>
    %6 = vector.broadcast %4 : vector<1x16xf32> to vector<16x16xf32>
    %7 = arith.subf %5, %6 : vector<16x16xf32>
    %8 = arith.mulf %7, %7 : vector<16x16xf32>
    %9 = vector.extract_strided_slice %1 {offsets = [0, 1], sizes = [16, 1], strides = [1, 1]} : vector<16x32xf32> to vector<16x1xf32>
    %c0_6 = arith.constant 0 : index
    %c1 = arith.constant 1 : index
    %c0_7 = arith.constant 0 : index
    %c0_8 = arith.constant 0 : index
    %10 = vector.load %arg2[%c0_6, %c1, %c0_7, %c0_8] : memref<1x3x1x16xf32, #tpu.memory_space<vmem>>, vector<1x1x1x16xf32>
    %11 = vector.shape_cast %10 : vector<1x1x1x16xf32> to vector<1x16xf32>
    %12 = vector.broadcast %9 : vector<16x1xf32> to vector<16x16xf32>
    %13 = vector.broadcast %11 : vector<1x16xf32> to vector<16x16xf32>
    %14 = arith.subf %12, %13 : vector<16x16xf32>
    %15 = arith.mulf %14, %14 : vector<16x16xf32>
    %16 = arith.addf %8, %15 : vector<16x16xf32>
    %17 = vector.extract_strided_slice %1 {offsets = [0, 2], sizes = [16, 1], strides = [1, 1]} : vector<16x32xf32> to vector<16x1xf32>
    %c0_9 = arith.constant 0 : index
    %c2 = arith.constant 2 : index
    %c0_10 = arith.constant 0 : index
    %c0_11 = arith.constant 0 : index
    %18 = vector.load %arg2[%c0_9, %c2, %c0_10, %c0_11] : memref<1x3x1x16xf32, #tpu.memory_space<vmem>>, vector<1x1x1x16xf32>
    %19 = vector.shape_cast %18 : vector<1x1x1x16xf32> to vector<1x16xf32>
    %20 = vector.broadcast %17 : vector<16x1xf32> to vector<16x16xf32>
    %21 = vector.broadcast %19 : vector<1x16xf32> to vector<16x16xf32>
    %22 = arith.subf %20, %21 : vector<16x16xf32>
    %23 = arith.mulf %22, %22 : vector<16x16xf32>
    %24 = arith.addf %16, %23 : vector<16x16xf32>
    %cst = arith.constant 1.600000e-01 : f32
    %25 = vector.broadcast %cst : f32 to vector<16x16xf32>
    %26 = arith.cmpf olt, %24, %25 : vector<16x16xf32>
    %27 = arith.extui %26 : vector<16x16xi1> to vector<16x16xi32>
    %28 = arith.sitofp %27 : vector<16x16xi32> to vector<16x16xf32>
    %cst_12 = arith.constant dense<0.000000e+00> : vector<16xf32>
    %29 = vector.multi_reduction <add>, %28, %cst_12 [1] : vector<16x16xf32> to vector<16xf32>
    %30 = vector.shape_cast %29 : vector<16xf32> to vector<16x1xf32>
    %31 = tpu.iota {dimensions = array<i32: 1>} : vector<16x16xi32>
    %32 = arith.sitofp %31 : vector<16x16xi32> to vector<16x16xf32>
    %cst_13 = arith.constant 1.600000e+01 : f32
    %33 = vector.broadcast %cst_13 : f32 to vector<16x16xf32>
    %34 = arith.select %26, %32, %33 : vector<16x16xi1>, vector<16x16xf32>
    %35 = tpu.iota {dimensions = array<i32: 1>} : vector<1x4xi32>
    %36 = arith.sitofp %35 : vector<1x4xi32> to vector<1x4xf32>
    %cst_14 = arith.constant 0.000000e+00 : f32
    %37 = vector.broadcast %cst_14 : f32 to vector<16x4xf32>
    %cst_15 = arith.constant dense<0x7F800000> : vector<16xf32>
    %38 = vector.multi_reduction <minimumf>, %34, %cst_15 [1] : vector<16x16xf32> to vector<16xf32>
    %39 = vector.shape_cast %38 : vector<16xf32> to vector<16x1xf32>
    %40 = vector.broadcast %39 : vector<16x1xf32> to vector<16x16xf32>
    %41 = arith.cmpf oeq, %32, %40 : vector<16x16xf32>
    %cst_16 = arith.constant 1.000000e+00 : f32
    %cst_17 = arith.constant 0.000000e+00 : f32
    %42 = vector.broadcast %cst_16 : f32 to vector<16x16xf32>
    %43 = vector.broadcast %cst_17 : f32 to vector<16x16xf32>
    %44 = arith.select %41, %42, %43 : vector<16x16xi1>, vector<16x16xf32>
    %45 = arith.truncf %44 : vector<16x16xf32> to vector<16x16xbf16>
    %c0_18 = arith.constant 0 : index
    %c0_19 = arith.constant 0 : index
    %46 = vector.load %arg12[%c0_18, %c0_19] : memref<64x16xbf16, #tpu.memory_space<vmem>>, vector<16x16xbf16>
    tpu.vector_store %arg12[%c0_18, %c0_19], %45 {strides = array<i32>} : memref<64x16xbf16, #tpu.memory_space<vmem>>, vector<16x16xbf16>,
    %cst_20 = arith.constant 0.000000e+00 : f32
    %47 = vector.broadcast %cst_20 : f32 to vector<1x4xf32>
    %48 = arith.cmpf oeq, %36, %47 : vector<1x4xf32>
    %cst_21 = arith.constant 1.000000e+00 : f32
    %cst_22 = arith.constant 0.000000e+00 : f32
    %49 = vector.broadcast %cst_21 : f32 to vector<1x4xf32>
    %50 = vector.broadcast %cst_22 : f32 to vector<1x4xf32>
    %51 = arith.select %48, %49, %50 : vector<1x4xi1>, vector<1x4xf32>
    %52 = vector.broadcast %39 : vector<16x1xf32> to vector<16x4xf32>
    %53 = vector.broadcast %51 : vector<1x4xf32> to vector<16x4xf32>
    %54 = arith.mulf %52, %53 : vector<16x4xf32>
    %55 = arith.addf %37, %54 : vector<16x4xf32>
    %cst_23 = arith.constant 1.600000e+01 : f32
    %56 = vector.broadcast %cst_23 : f32 to vector<16x16xf32>
    %57 = arith.select %41, %56, %34 : vector<16x16xi1>, vector<16x16xf32>
    %cst_24 = arith.constant dense<0x7F800000> : vector<16xf32>
    %58 = vector.multi_reduction <minimumf>, %57, %cst_24 [1] : vector<16x16xf32> to vector<16xf32>
    %59 = vector.shape_cast %58 : vector<16xf32> to vector<16x1xf32>
    %60 = vector.broadcast %59 : vector<16x1xf32> to vector<16x16xf32>
    %61 = arith.cmpf oeq, %32, %60 : vector<16x16xf32>
    %cst_25 = arith.constant 1.000000e+00 : f32
    %cst_26 = arith.constant 0.000000e+00 : f32
    %62 = vector.broadcast %cst_25 : f32 to vector<16x16xf32>
    %63 = vector.broadcast %cst_26 : f32 to vector<16x16xf32>
    %64 = arith.select %61, %62, %63 : vector<16x16xi1>, vector<16x16xf32>
    %cst_27 = arith.constant 1.500000e+00 : f32
    %65 = vector.broadcast %cst_27 : f32 to vector<16x1xf32>
    %66 = arith.cmpf ogt, %30, %65 : vector<16x1xf32>
    %67 = vector.shape_cast %66 : vector<16x1xi1> to vector<16x1xi1>
    %68 = vector.broadcast %67 : vector<16x1xi1> to vector<16x16xi1>
    %69 = arith.select %68, %64, %44 : vector<16x16xi1>, vector<16x16xf32>
    %70 = arith.select %66, %59, %39 : vector<16x1xi1>, vector<16x1xf32>
    %71 = arith.truncf %69 : vector<16x16xf32> to vector<16x16xbf16>
    %c16 = arith.constant 16 : index
    %c0_28 = arith.constant 0 : index
    %72 = vector.load %arg12[%c16, %c0_28] : memref<64x16xbf16, #tpu.memory_space<vmem>>, vector<16x16xbf16>
    tpu.vector_store %arg12[%c16, %c0_28], %71 {strides = array<i32>} : memref<64x16xbf16, #tpu.memory_space<vmem>>, vector<16x16xbf16>,
    %cst_29 = arith.constant 1.000000e+00 : f32
    %73 = vector.broadcast %cst_29 : f32 to vector<1x4xf32>
    %74 = arith.cmpf oeq, %36, %73 : vector<1x4xf32>
    %cst_30 = arith.constant 1.000000e+00 : f32
    %cst_31 = arith.constant 0.000000e+00 : f32
    %75 = vector.broadcast %cst_30 : f32 to vector<1x4xf32>
    %76 = vector.broadcast %cst_31 : f32 to vector<1x4xf32>
    %77 = arith.select %74, %75, %76 : vector<1x4xi1>, vector<1x4xf32>
    %78 = vector.broadcast %70 : vector<16x1xf32> to vector<16x4xf32>
    %79 = vector.broadcast %77 : vector<1x4xf32> to vector<16x4xf32>
    %80 = arith.mulf %78, %79 : vector<16x4xf32>
    %81 = arith.addf %55, %80 : vector<16x4xf32>
    %cst_32 = arith.constant 1.600000e+01 : f32
    %82 = vector.broadcast %cst_32 : f32 to vector<16x16xf32>
    %83 = arith.select %61, %82, %57 : vector<16x16xi1>, vector<16x16xf32>
    %cst_33 = arith.constant dense<0x7F800000> : vector<16xf32>
    %84 = vector.multi_reduction <minimumf>, %83, %cst_33 [1] : vector<16x16xf32> to vector<16xf32>
    %85 = vector.shape_cast %84 : vector<16xf32> to vector<16x1xf32>
    %86 = vector.broadcast %85 : vector<16x1xf32> to vector<16x16xf32>
    %87 = arith.cmpf oeq, %32, %86 : vector<16x16xf32>
    %cst_34 = arith.constant 1.000000e+00 : f32
    %cst_35 = arith.constant 0.000000e+00 : f32
    %88 = vector.broadcast %cst_34 : f32 to vector<16x16xf32>
    %89 = vector.broadcast %cst_35 : f32 to vector<16x16xf32>
    %90 = arith.select %87, %88, %89 : vector<16x16xi1>, vector<16x16xf32>
    %cst_36 = arith.constant 2.500000e+00 : f32
    %91 = vector.broadcast %cst_36 : f32 to vector<16x1xf32>
    %92 = arith.cmpf ogt, %30, %91 : vector<16x1xf32>
    %93 = vector.shape_cast %92 : vector<16x1xi1> to vector<16x1xi1>
    %94 = vector.broadcast %93 : vector<16x1xi1> to vector<16x16xi1>
    %95 = arith.select %94, %90, %44 : vector<16x16xi1>, vector<16x16xf32>
    %96 = arith.select %92, %85, %39 : vector<16x1xi1>, vector<16x1xf32>
    %97 = arith.truncf %95 : vector<16x16xf32> to vector<16x16xbf16>
    %c32 = arith.constant 32 : index
    %c0_37 = arith.constant 0 : index
    %98 = vector.load %arg12[%c32, %c0_37] : memref<64x16xbf16, #tpu.memory_space<vmem>>, vector<16x16xbf16>
    tpu.vector_store %arg12[%c32, %c0_37], %97 {strides = array<i32>} : memref<64x16xbf16, #tpu.memory_space<vmem>>, vector<16x16xbf16>,
    %cst_38 = arith.constant 2.000000e+00 : f32
    %99 = vector.broadcast %cst_38 : f32 to vector<1x4xf32>
    %100 = arith.cmpf oeq, %36, %99 : vector<1x4xf32>
    %cst_39 = arith.constant 1.000000e+00 : f32
    %cst_40 = arith.constant 0.000000e+00 : f32
    %101 = vector.broadcast %cst_39 : f32 to vector<1x4xf32>
    %102 = vector.broadcast %cst_40 : f32 to vector<1x4xf32>
    %103 = arith.select %100, %101, %102 : vector<1x4xi1>, vector<1x4xf32>
    %104 = vector.broadcast %96 : vector<16x1xf32> to vector<16x4xf32>
    %105 = vector.broadcast %103 : vector<1x4xf32> to vector<16x4xf32>
    %106 = arith.mulf %104, %105 : vector<16x4xf32>
    %107 = arith.addf %81, %106 : vector<16x4xf32>
    %cst_41 = arith.constant 1.600000e+01 : f32
    %108 = vector.broadcast %cst_41 : f32 to vector<16x16xf32>
    %109 = arith.select %87, %108, %83 : vector<16x16xi1>, vector<16x16xf32>
    %cst_42 = arith.constant dense<0x7F800000> : vector<16xf32>
    %110 = vector.multi_reduction <minimumf>, %109, %cst_42 [1] : vector<16x16xf32> to vector<16xf32>
    %111 = vector.shape_cast %110 : vector<16xf32> to vector<16x1xf32>
    %112 = vector.broadcast %111 : vector<16x1xf32> to vector<16x16xf32>
    %113 = arith.cmpf oeq, %32, %112 : vector<16x16xf32>
    %cst_43 = arith.constant 1.000000e+00 : f32
    %cst_44 = arith.constant 0.000000e+00 : f32
    %114 = vector.broadcast %cst_43 : f32 to vector<16x16xf32>
    %115 = vector.broadcast %cst_44 : f32 to vector<16x16xf32>
    %116 = arith.select %113, %114, %115 : vector<16x16xi1>, vector<16x16xf32>
    %cst_45 = arith.constant 3.500000e+00 : f32
    %117 = vector.broadcast %cst_45 : f32 to vector<16x1xf32>
    %118 = arith.cmpf ogt, %30, %117 : vector<16x1xf32>
    %119 = vector.shape_cast %118 : vector<16x1xi1> to vector<16x1xi1>
    %120 = vector.broadcast %119 : vector<16x1xi1> to vector<16x16xi1>
    %121 = arith.select %120, %116, %44 : vector<16x16xi1>, vector<16x16xf32>
    %122 = arith.select %118, %111, %39 : vector<16x1xi1>, vector<16x1xf32>
    %123 = arith.truncf %121 : vector<16x16xf32> to vector<16x16xbf16>
    %c48 = arith.constant 48 : index
    %c0_46 = arith.constant 0 : index
    %124 = vector.load %arg12[%c48, %c0_46] : memref<64x16xbf16, #tpu.memory_space<vmem>>, vector<16x16xbf16>
    tpu.vector_store %arg12[%c48, %c0_46], %123 {strides = array<i32>} : memref<64x16xbf16, #tpu.memory_space<vmem>>, vector<16x16xbf16>,
    %cst_47 = arith.constant 3.000000e+00 : f32
    %125 = vector.broadcast %cst_47 : f32 to vector<1x4xf32>
    %126 = arith.cmpf oeq, %36, %125 : vector<1x4xf32>
    %cst_48 = arith.constant 1.000000e+00 : f32
    %cst_49 = arith.constant 0.000000e+00 : f32
    %127 = vector.broadcast %cst_48 : f32 to vector<1x4xf32>
    %128 = vector.broadcast %cst_49 : f32 to vector<1x4xf32>
    %129 = arith.select %126, %127, %128 : vector<1x4xi1>, vector<1x4xf32>
    %130 = vector.broadcast %122 : vector<16x1xf32> to vector<16x4xf32>
    %131 = vector.broadcast %129 : vector<1x4xf32> to vector<16x4xf32>
    %132 = arith.mulf %130, %131 : vector<16x4xf32>
    %133 = arith.addf %107, %132 : vector<16x4xf32>
    %134 = arith.fptosi %133 : vector<16x4xf32> to vector<16x4xi32>
    %c0_50 = arith.constant 0 : index
    %c0_51 = arith.constant 0 : index
    %c0_52 = arith.constant 0 : index
    %135 = vector.load %arg11[%c0_50, %c0_51, %c0_52] : memref<1x16x4xi32, #tpu.memory_space<vmem>>, vector<1x16x4xi32>
    %136 = vector.shape_cast %135 : vector<1x16x4xi32> to vector<16x4xi32>
    %137 = vector.shape_cast %134 : vector<16x4xi32> to vector<1x16x4xi32>
    tpu.vector_store %arg11[%c0_50, %c0_51, %c0_52], %137 {strides = array<i32>} : memref<1x16x4xi32, #tpu.memory_space<vmem>>, vector<1x16x4xi32>,
    %c0_53 = arith.constant 0 : index
    %c0_54 = arith.constant 0 : index
    %138 = vector.load %arg12[%c0_53, %c0_54] : memref<64x16xbf16, #tpu.memory_space<vmem>>, vector<64x16xbf16>
    %c0_55 = arith.constant 0 : index
    %c0_56 = arith.constant 0 : index
    %c0_57 = arith.constant 0 : index
    %139 = vector.load %arg3[%c0_55, %c0_56, %c0_57] : memref<4x32x64xf32, #tpu.memory_space<vmem>>, vector<1x32x64xf32>
    %140 = vector.shape_cast %139 : vector<1x32x64xf32> to vector<32x64xf32>
    %cst_58 = arith.constant dense<0.000000e+00> : vector<16x64xf32>
    %141 = tpu.matmul %1, %140, %cst_58 {dimension_numbers = #tpu.dot_dimension_numbers<[1], [0], [0], [1], [0, 0, 1, 1], [], []>} : vector<16x32xf32>, vector<32x64xf32>, vector<16x64xf32> -> vector<16x64xf32>
    %142 = vector.extract_strided_slice %141 {offsets = [0, 0], sizes = [16, 32], strides = [1, 1]} : vector<16x64xf32> to vector<16x32xf32>
    %c0_59 = arith.constant 0 : index
    %c0_60 = arith.constant 0 : index
    %c0_61 = arith.constant 0 : index
    %143 = vector.load %arg4[%c0_59, %c0_60, %c0_61] : memref<4x1x32xf32, #tpu.memory_space<vmem>>, vector<1x1x32xf32>
    %144 = vector.shape_cast %143 : vector<1x1x32xf32> to vector<1x32xf32>
    %145 = vector.broadcast %144 : vector<1x32xf32> to vector<16x32xf32>
    %146 = arith.addf %142, %145 : vector<16x32xf32>
    %147 = vector.extract_strided_slice %141 {offsets = [0, 32], sizes = [16, 32], strides = [1, 1]} : vector<16x64xf32> to vector<16x32xf32>
    %148 = arith.truncf %147 : vector<16x32xf32> to vector<16x32xbf16>
    %cst_62 = arith.constant dense<0.000000e+00> : vector<64x32xf32>
    %149 = tpu.matmul %138, %148, %cst_62 {dimension_numbers = #tpu.dot_dimension_numbers<[1], [0], [0], [1], [0, 0, 1, 1], [], []>} : vector<64x16xbf16>, vector<16x32xbf16>, vector<64x32xf32> -> vector<64x32xf32>
    %c0_63 = arith.constant 0 : index
    %c0_64 = arith.constant 0 : index
    %c0_65 = arith.constant 0 : index
    %150 = vector.load %arg5[%c0_63, %c0_64, %c0_65] : memref<4x1x32xf32, #tpu.memory_space<vmem>>, vector<1x1x32xf32>
    %151 = vector.shape_cast %150 : vector<1x1x32xf32> to vector<1x32xf32>
    %c0_66 = arith.constant 0 : index
    %c0_67 = arith.constant 0 : index
    %c0_68 = arith.constant 0 : index
    %152 = vector.load %arg6[%c0_66, %c0_67, %c0_68] : memref<4x1x32xf32, #tpu.memory_space<vmem>>, vector<1x1x32xf32>
    %153 = vector.shape_cast %152 : vector<1x1x32xf32> to vector<1x32xf32>
    %154 = vector.extract_strided_slice %149 {offsets = [0, 0], sizes = [16, 32], strides = [1, 1]} : vector<64x32xf32> to vector<16x32xf32>
    %155 = arith.addf %146, %154 : vector<16x32xf32>
    %cst_69 = arith.constant 0.000000e+00 : f32
    %156 = vector.broadcast %cst_69 : f32 to vector<16x32xf32>
    %157 = arith.cmpf oge, %155, %156 : vector<16x32xf32>
    %cst_70 = arith.constant 2.000000e-01 : f32
    %158 = vector.broadcast %cst_70 : f32 to vector<16x32xf32>
    %159 = arith.mulf %158, %155 : vector<16x32xf32>
    %160 = arith.select %157, %155, %159 : vector<16x32xi1>, vector<16x32xf32>
    %161 = vector.broadcast %151 : vector<1x32xf32> to vector<16x32xf32>
    %162 = arith.mulf %160, %161 : vector<16x32xf32>
    %163 = vector.broadcast %153 : vector<1x32xf32> to vector<16x32xf32>
    %164 = arith.addf %162, %163 : vector<16x32xf32>
    %165 = vector.extract_strided_slice %149 {offsets = [16, 0], sizes = [16, 32], strides = [1, 1]} : vector<64x32xf32> to vector<16x32xf32>
    %166 = arith.addf %146, %165 : vector<16x32xf32>
    %cst_71 = arith.constant 0.000000e+00 : f32
    %167 = vector.broadcast %cst_71 : f32 to vector<16x32xf32>
    %168 = arith.cmpf oge, %166, %167 : vector<16x32xf32>
    %cst_72 = arith.constant 2.000000e-01 : f32
    %169 = vector.broadcast %cst_72 : f32 to vector<16x32xf32>
    %170 = arith.mulf %169, %166 : vector<16x32xf32>
    %171 = arith.select %168, %166, %170 : vector<16x32xi1>, vector<16x32xf32>
    %172 = vector.broadcast %151 : vector<1x32xf32> to vector<16x32xf32>
    %173 = arith.mulf %171, %172 : vector<16x32xf32>
    %174 = vector.broadcast %153 : vector<1x32xf32> to vector<16x32xf32>
    %175 = arith.addf %173, %174 : vector<16x32xf32>
    %176 = arith.maximumf %164, %175 : vector<16x32xf32>
    %177 = vector.extract_strided_slice %149 {offsets = [32, 0], sizes = [16, 32], strides = [1, 1]} : vector<64x32xf32> to vector<16x32xf32>
    %178 = arith.addf %146, %177 : vector<16x32xf32>
    %cst_73 = arith.constant 0.000000e+00 : f32
    %179 = vector.broadcast %cst_73 : f32 to vector<16x32xf32>
    %180 = arith.cmpf oge, %178, %179 : vector<16x32xf32>
    %cst_74 = arith.constant 2.000000e-01 : f32
    %181 = vector.broadcast %cst_74 : f32 to vector<16x32xf32>
    %182 = arith.mulf %181, %178 : vector<16x32xf32>
    %183 = arith.select %180, %178, %182 : vector<16x32xi1>, vector<16x32xf32>
    %184 = vector.broadcast %151 : vector<1x32xf32> to vector<16x32xf32>
    %185 = arith.mulf %183, %184 : vector<16x32xf32>
    %186 = vector.broadcast %153 : vector<1x32xf32> to vector<16x32xf32>
    %187 = arith.addf %185, %186 : vector<16x32xf32>
    %188 = arith.maximumf %176, %187 : vector<16x32xf32>
    %189 = vector.extract_strided_slice %149 {offsets = [48, 0], sizes = [16, 32], strides = [1, 1]} : vector<64x32xf32> to vector<16x32xf32>
    %190 = arith.addf %146, %189 : vector<16x32xf32>
    %cst_75 = arith.constant 0.000000e+00 : f32
    %191 = vector.broadcast %cst_75 : f32 to vector<16x32xf32>
    %192 = arith.cmpf oge, %190, %191 : vector<16x32xf32>
    %cst_76 = arith.constant 2.000000e-01 : f32
    %193 = vector.broadcast %cst_76 : f32 to vector<16x32xf32>
    %194 = arith.mulf %193, %190 : vector<16x32xf32>
    %195 = arith.select %192, %190, %194 : vector<16x32xi1>, vector<16x32xf32>
    %196 = vector.broadcast %151 : vector<1x32xf32> to vector<16x32xf32>
    %197 = arith.mulf %195, %196 : vector<16x32xf32>
    %198 = vector.broadcast %153 : vector<1x32xf32> to vector<16x32xf32>
    %199 = arith.addf %197, %198 : vector<16x32xf32>
    %200 = arith.maximumf %188, %199 : vector<16x32xf32>
    %c1_77 = arith.constant 1 : index
    %c0_78 = arith.constant 0 : index
    %c0_79 = arith.constant 0 : index
    %201 = vector.load %arg3[%c1_77, %c0_78, %c0_79] : memref<4x32x64xf32, #tpu.memory_space<vmem>>, vector<1x32x64xf32>
    %202 = vector.shape_cast %201 : vector<1x32x64xf32> to vector<32x64xf32>
    %cst_80 = arith.constant dense<0.000000e+00> : vector<16x64xf32>
    %203 = tpu.matmul %200, %202, %cst_80 {dimension_numbers = #tpu.dot_dimension_numbers<[1], [0], [0], [1], [0, 0, 1, 1], [], []>} : vector<16x32xf32>, vector<32x64xf32>, vector<16x64xf32> -> vector<16x64xf32>
    %204 = vector.extract_strided_slice %203 {offsets = [0, 0], sizes = [16, 32], strides = [1, 1]} : vector<16x64xf32> to vector<16x32xf32>
    %c1_81 = arith.constant 1 : index
    %c0_82 = arith.constant 0 : index
    %c0_83 = arith.constant 0 : index
    %205 = vector.load %arg4[%c1_81, %c0_82, %c0_83] : memref<4x1x32xf32, #tpu.memory_space<vmem>>, vector<1x1x32xf32>
    %206 = vector.shape_cast %205 : vector<1x1x32xf32> to vector<1x32xf32>
    %207 = vector.broadcast %206 : vector<1x32xf32> to vector<16x32xf32>
    %208 = arith.addf %204, %207 : vector<16x32xf32>
    %209 = vector.extract_strided_slice %203 {offsets = [0, 32], sizes = [16, 32], strides = [1, 1]} : vector<16x64xf32> to vector<16x32xf32>
    %210 = arith.truncf %209 : vector<16x32xf32> to vector<16x32xbf16>
    %cst_84 = arith.constant dense<0.000000e+00> : vector<64x32xf32>
    %211 = tpu.matmul %138, %210, %cst_84 {dimension_numbers = #tpu.dot_dimension_numbers<[1], [0], [0], [1], [0, 0, 1, 1], [], []>} : vector<64x16xbf16>, vector<16x32xbf16>, vector<64x32xf32> -> vector<64x32xf32>
    %c1_85 = arith.constant 1 : index
    %c0_86 = arith.constant 0 : index
    %c0_87 = arith.constant 0 : index
    %212 = vector.load %arg5[%c1_85, %c0_86, %c0_87] : memref<4x1x32xf32, #tpu.memory_space<vmem>>, vector<1x1x32xf32>
    %213 = vector.shape_cast %212 : vector<1x1x32xf32> to vector<1x32xf32>
    %c1_88 = arith.constant 1 : index
    %c0_89 = arith.constant 0 : index
    %c0_90 = arith.constant 0 : index
    %214 = vector.load %arg6[%c1_88, %c0_89, %c0_90] : memref<4x1x32xf32, #tpu.memory_space<vmem>>, vector<1x1x32xf32>
    %215 = vector.shape_cast %214 : vector<1x1x32xf32> to vector<1x32xf32>
    %216 = vector.extract_strided_slice %211 {offsets = [0, 0], sizes = [16, 32], strides = [1, 1]} : vector<64x32xf32> to vector<16x32xf32>
    %217 = arith.addf %208, %216 : vector<16x32xf32>
    %cst_91 = arith.constant 0.000000e+00 : f32
    %218 = vector.broadcast %cst_91 : f32 to vector<16x32xf32>
    %219 = arith.cmpf oge, %217, %218 : vector<16x32xf32>
    %cst_92 = arith.constant 2.000000e-01 : f32
    %220 = vector.broadcast %cst_92 : f32 to vector<16x32xf32>
    %221 = arith.mulf %220, %217 : vector<16x32xf32>
    %222 = arith.select %219, %217, %221 : vector<16x32xi1>, vector<16x32xf32>
    %223 = vector.broadcast %213 : vector<1x32xf32> to vector<16x32xf32>
    %224 = arith.mulf %222, %223 : vector<16x32xf32>
    %225 = vector.broadcast %215 : vector<1x32xf32> to vector<16x32xf32>
    %226 = arith.addf %224, %225 : vector<16x32xf32>
    %227 = vector.extract_strided_slice %211 {offsets = [16, 0], sizes = [16, 32], strides = [1, 1]} : vector<64x32xf32> to vector<16x32xf32>
    %228 = arith.addf %208, %227 : vector<16x32xf32>
    %cst_93 = arith.constant 0.000000e+00 : f32
    %229 = vector.broadcast %cst_93 : f32 to vector<16x32xf32>
    %230 = arith.cmpf oge, %228, %229 : vector<16x32xf32>
    %cst_94 = arith.constant 2.000000e-01 : f32
    %231 = vector.broadcast %cst_94 : f32 to vector<16x32xf32>
    %232 = arith.mulf %231, %228 : vector<16x32xf32>
    %233 = arith.select %230, %228, %232 : vector<16x32xi1>, vector<16x32xf32>
    %234 = vector.broadcast %213 : vector<1x32xf32> to vector<16x32xf32>
    %235 = arith.mulf %233, %234 : vector<16x32xf32>
    %236 = vector.broadcast %215 : vector<1x32xf32> to vector<16x32xf32>
    %237 = arith.addf %235, %236 : vector<16x32xf32>
    %238 = arith.maximumf %226, %237 : vector<16x32xf32>
    %239 = vector.extract_strided_slice %211 {offsets = [32, 0], sizes = [16, 32], strides = [1, 1]} : vector<64x32xf32> to vector<16x32xf32>
    %240 = arith.addf %208, %239 : vector<16x32xf32>
    %cst_95 = arith.constant 0.000000e+00 : f32
    %241 = vector.broadcast %cst_95 : f32 to vector<16x32xf32>
    %242 = arith.cmpf oge, %240, %241 : vector<16x32xf32>
    %cst_96 = arith.constant 2.000000e-01 : f32
    %243 = vector.broadcast %cst_96 : f32 to vector<16x32xf32>
    %244 = arith.mulf %243, %240 : vector<16x32xf32>
    %245 = arith.select %242, %240, %244 : vector<16x32xi1>, vector<16x32xf32>
    %246 = vector.broadcast %213 : vector<1x32xf32> to vector<16x32xf32>
    %247 = arith.mulf %245, %246 : vector<16x32xf32>
    %248 = vector.broadcast %215 : vector<1x32xf32> to vector<16x32xf32>
    %249 = arith.addf %247, %248 : vector<16x32xf32>
    %250 = arith.maximumf %238, %249 : vector<16x32xf32>
    %251 = vector.extract_strided_slice %211 {offsets = [48, 0], sizes = [16, 32], strides = [1, 1]} : vector<64x32xf32> to vector<16x32xf32>
    %252 = arith.addf %208, %251 : vector<16x32xf32>
    %cst_97 = arith.constant 0.000000e+00 : f32
    %253 = vector.broadcast %cst_97 : f32 to vector<16x32xf32>
    %254 = arith.cmpf oge, %252, %253 : vector<16x32xf32>
    %cst_98 = arith.constant 2.000000e-01 : f32
    %255 = vector.broadcast %cst_98 : f32 to vector<16x32xf32>
    %256 = arith.mulf %255, %252 : vector<16x32xf32>
    %257 = arith.select %254, %252, %256 : vector<16x32xi1>, vector<16x32xf32>
    %258 = vector.broadcast %213 : vector<1x32xf32> to vector<16x32xf32>
    %259 = arith.mulf %257, %258 : vector<16x32xf32>
    %260 = vector.broadcast %215 : vector<1x32xf32> to vector<16x32xf32>
    %261 = arith.addf %259, %260 : vector<16x32xf32>
    %262 = arith.maximumf %250, %261 : vector<16x32xf32>
    %c2_99 = arith.constant 2 : index
    %c0_100 = arith.constant 0 : index
    %c0_101 = arith.constant 0 : index
    %263 = vector.load %arg3[%c2_99, %c0_100, %c0_101] : memref<4x32x64xf32, #tpu.memory_space<vmem>>, vector<1x32x64xf32>
    %264 = vector.shape_cast %263 : vector<1x32x64xf32> to vector<32x64xf32>
    %cst_102 = arith.constant dense<0.000000e+00> : vector<16x64xf32>
    %265 = tpu.matmul %262, %264, %cst_102 {dimension_numbers = #tpu.dot_dimension_numbers<[1], [0], [0], [1], [0, 0, 1, 1], [], []>} : vector<16x32xf32>, vector<32x64xf32>, vector<16x64xf32> -> vector<16x64xf32>
    %266 = vector.extract_strided_slice %265 {offsets = [0, 0], sizes = [16, 32], strides = [1, 1]} : vector<16x64xf32> to vector<16x32xf32>
    %c2_103 = arith.constant 2 : index
    %c0_104 = arith.constant 0 : index
    %c0_105 = arith.constant 0 : index
    %267 = vector.load %arg4[%c2_103, %c0_104, %c0_105] : memref<4x1x32xf32, #tpu.memory_space<vmem>>, vector<1x1x32xf32>
    %268 = vector.shape_cast %267 : vector<1x1x32xf32> to vector<1x32xf32>
    %269 = vector.broadcast %268 : vector<1x32xf32> to vector<16x32xf32>
    %270 = arith.addf %266, %269 : vector<16x32xf32>
    %271 = vector.extract_strided_slice %265 {offsets = [0, 32], sizes = [16, 32], strides = [1, 1]} : vector<16x64xf32> to vector<16x32xf32>
    %272 = arith.truncf %271 : vector<16x32xf32> to vector<16x32xbf16>
    %cst_106 = arith.constant dense<0.000000e+00> : vector<64x32xf32>
    %273 = tpu.matmul %138, %272, %cst_106 {dimension_numbers = #tpu.dot_dimension_numbers<[1], [0], [0], [1], [0, 0, 1, 1], [], []>} : vector<64x16xbf16>, vector<16x32xbf16>, vector<64x32xf32> -> vector<64x32xf32>
    %c2_107 = arith.constant 2 : index
    %c0_108 = arith.constant 0 : index
    %c0_109 = arith.constant 0 : index
    %274 = vector.load %arg5[%c2_107, %c0_108, %c0_109] : memref<4x1x32xf32, #tpu.memory_space<vmem>>, vector<1x1x32xf32>
    %275 = vector.shape_cast %274 : vector<1x1x32xf32> to vector<1x32xf32>
    %c2_110 = arith.constant 2 : index
    %c0_111 = arith.constant 0 : index
    %c0_112 = arith.constant 0 : index
    %276 = vector.load %arg6[%c2_110, %c0_111, %c0_112] : memref<4x1x32xf32, #tpu.memory_space<vmem>>, vector<1x1x32xf32>
    %277 = vector.shape_cast %276 : vector<1x1x32xf32> to vector<1x32xf32>
    %278 = vector.extract_strided_slice %273 {offsets = [0, 0], sizes = [16, 32], strides = [1, 1]} : vector<64x32xf32> to vector<16x32xf32>
    %279 = arith.addf %270, %278 : vector<16x32xf32>
    %cst_113 = arith.constant 0.000000e+00 : f32
    %280 = vector.broadcast %cst_113 : f32 to vector<16x32xf32>
    %281 = arith.cmpf oge, %279, %280 : vector<16x32xf32>
    %cst_114 = arith.constant 2.000000e-01 : f32
    %282 = vector.broadcast %cst_114 : f32 to vector<16x32xf32>
    %283 = arith.mulf %282, %279 : vector<16x32xf32>
    %284 = arith.select %281, %279, %283 : vector<16x32xi1>, vector<16x32xf32>
    %285 = vector.broadcast %275 : vector<1x32xf32> to vector<16x32xf32>
    %286 = arith.mulf %284, %285 : vector<16x32xf32>
    %287 = vector.broadcast %277 : vector<1x32xf32> to vector<16x32xf32>
    %288 = arith.addf %286, %287 : vector<16x32xf32>
    %289 = vector.extract_strided_slice %273 {offsets = [16, 0], sizes = [16, 32], strides = [1, 1]} : vector<64x32xf32> to vector<16x32xf32>
    %290 = arith.addf %270, %289 : vector<16x32xf32>
    %cst_115 = arith.constant 0.000000e+00 : f32
    %291 = vector.broadcast %cst_115 : f32 to vector<16x32xf32>
    %292 = arith.cmpf oge, %290, %291 : vector<16x32xf32>
    %cst_116 = arith.constant 2.000000e-01 : f32
    %293 = vector.broadcast %cst_116 : f32 to vector<16x32xf32>
    %294 = arith.mulf %293, %290 : vector<16x32xf32>
    %295 = arith.select %292, %290, %294 : vector<16x32xi1>, vector<16x32xf32>
    %296 = vector.broadcast %275 : vector<1x32xf32> to vector<16x32xf32>
    %297 = arith.mulf %295, %296 : vector<16x32xf32>
    %298 = vector.broadcast %277 : vector<1x32xf32> to vector<16x32xf32>
    %299 = arith.addf %297, %298 : vector<16x32xf32>
    %300 = arith.maximumf %288, %299 : vector<16x32xf32>
    %301 = vector.extract_strided_slice %273 {offsets = [32, 0], sizes = [16, 32], strides = [1, 1]} : vector<64x32xf32> to vector<16x32xf32>
    %302 = arith.addf %270, %301 : vector<16x32xf32>
    %cst_117 = arith.constant 0.000000e+00 : f32
    %303 = vector.broadcast %cst_117 : f32 to vector<16x32xf32>
    %304 = arith.cmpf oge, %302, %303 : vector<16x32xf32>
    %cst_118 = arith.constant 2.000000e-01 : f32
    %305 = vector.broadcast %cst_118 : f32 to vector<16x32xf32>
    %306 = arith.mulf %305, %302 : vector<16x32xf32>
    %307 = arith.select %304, %302, %306 : vector<16x32xi1>, vector<16x32xf32>
    %308 = vector.broadcast %275 : vector<1x32xf32> to vector<16x32xf32>
    %309 = arith.mulf %307, %308 : vector<16x32xf32>
    %310 = vector.broadcast %277 : vector<1x32xf32> to vector<16x32xf32>
    %311 = arith.addf %309, %310 : vector<16x32xf32>
    %312 = arith.maximumf %300, %311 : vector<16x32xf32>
    %313 = vector.extract_strided_slice %273 {offsets = [48, 0], sizes = [16, 32], strides = [1, 1]} : vector<64x32xf32> to vector<16x32xf32>
    %314 = arith.addf %270, %313 : vector<16x32xf32>
    %cst_119 = arith.constant 0.000000e+00 : f32
    %315 = vector.broadcast %cst_119 : f32 to vector<16x32xf32>
    %316 = arith.cmpf oge, %314, %315 : vector<16x32xf32>
    %cst_120 = arith.constant 2.000000e-01 : f32
    %317 = vector.broadcast %cst_120 : f32 to vector<16x32xf32>
    %318 = arith.mulf %317, %314 : vector<16x32xf32>
    %319 = arith.select %316, %314, %318 : vector<16x32xi1>, vector<16x32xf32>
    %320 = vector.broadcast %275 : vector<1x32xf32> to vector<16x32xf32>
    %321 = arith.mulf %319, %320 : vector<16x32xf32>
    %322 = vector.broadcast %277 : vector<1x32xf32> to vector<16x32xf32>
    %323 = arith.addf %321, %322 : vector<16x32xf32>
    %324 = arith.maximumf %312, %323 : vector<16x32xf32>
    %c3 = arith.constant 3 : index
    %c0_121 = arith.constant 0 : index
    %c0_122 = arith.constant 0 : index
    %325 = vector.load %arg3[%c3, %c0_121, %c0_122] : memref<4x32x64xf32, #tpu.memory_space<vmem>>, vector<1x32x64xf32>
    %326 = vector.shape_cast %325 : vector<1x32x64xf32> to vector<32x64xf32>
    %cst_123 = arith.constant dense<0.000000e+00> : vector<16x64xf32>
    %327 = tpu.matmul %324, %326, %cst_123 {dimension_numbers = #tpu.dot_dimension_numbers<[1], [0], [0], [1], [0, 0, 1, 1], [], []>} : vector<16x32xf32>, vector<32x64xf32>, vector<16x64xf32> -> vector<16x64xf32>
    %328 = vector.extract_strided_slice %327 {offsets = [0, 0], sizes = [16, 32], strides = [1, 1]} : vector<16x64xf32> to vector<16x32xf32>
    %c3_124 = arith.constant 3 : index
    %c0_125 = arith.constant 0 : index
    %c0_126 = arith.constant 0 : index
    %329 = vector.load %arg4[%c3_124, %c0_125, %c0_126] : memref<4x1x32xf32, #tpu.memory_space<vmem>>, vector<1x1x32xf32>
    %330 = vector.shape_cast %329 : vector<1x1x32xf32> to vector<1x32xf32>
    %331 = vector.broadcast %330 : vector<1x32xf32> to vector<16x32xf32>
    %332 = arith.addf %328, %331 : vector<16x32xf32>
    %333 = vector.extract_strided_slice %327 {offsets = [0, 32], sizes = [16, 32], strides = [1, 1]} : vector<16x64xf32> to vector<16x32xf32>
    %334 = arith.truncf %333 : vector<16x32xf32> to vector<16x32xbf16>
    %cst_127 = arith.constant dense<0.000000e+00> : vector<64x32xf32>
    %335 = tpu.matmul %138, %334, %cst_127 {dimension_numbers = #tpu.dot_dimension_numbers<[1], [0], [0], [1], [0, 0, 1, 1], [], []>} : vector<64x16xbf16>, vector<16x32xbf16>, vector<64x32xf32> -> vector<64x32xf32>
    %c3_128 = arith.constant 3 : index
    %c0_129 = arith.constant 0 : index
    %c0_130 = arith.constant 0 : index
    %336 = vector.load %arg5[%c3_128, %c0_129, %c0_130] : memref<4x1x32xf32, #tpu.memory_space<vmem>>, vector<1x1x32xf32>
    %337 = vector.shape_cast %336 : vector<1x1x32xf32> to vector<1x32xf32>
    %c3_131 = arith.constant 3 : index
    %c0_132 = arith.constant 0 : index
    %c0_133 = arith.constant 0 : index
    %338 = vector.load %arg6[%c3_131, %c0_132, %c0_133] : memref<4x1x32xf32, #tpu.memory_space<vmem>>, vector<1x1x32xf32>
    %339 = vector.shape_cast %338 : vector<1x1x32xf32> to vector<1x32xf32>
    %340 = vector.extract_strided_slice %335 {offsets = [0, 0], sizes = [16, 32], strides = [1, 1]} : vector<64x32xf32> to vector<16x32xf32>
    %341 = arith.addf %332, %340 : vector<16x32xf32>
    %cst_134 = arith.constant 0.000000e+00 : f32
    %342 = vector.broadcast %cst_134 : f32 to vector<16x32xf32>
    %343 = arith.cmpf oge, %341, %342 : vector<16x32xf32>
    %cst_135 = arith.constant 2.000000e-01 : f32
    %344 = vector.broadcast %cst_135 : f32 to vector<16x32xf32>
    %345 = arith.mulf %344, %341 : vector<16x32xf32>
    %346 = arith.select %343, %341, %345 : vector<16x32xi1>, vector<16x32xf32>
    %347 = vector.broadcast %337 : vector<1x32xf32> to vector<16x32xf32>
    %348 = arith.mulf %346, %347 : vector<16x32xf32>
    %349 = vector.broadcast %339 : vector<1x32xf32> to vector<16x32xf32>
    %350 = arith.addf %348, %349 : vector<16x32xf32>
    %351 = vector.extract_strided_slice %335 {offsets = [16, 0], sizes = [16, 32], strides = [1, 1]} : vector<64x32xf32> to vector<16x32xf32>
    %352 = arith.addf %332, %351 : vector<16x32xf32>
    %cst_136 = arith.constant 0.000000e+00 : f32
    %353 = vector.broadcast %cst_136 : f32 to vector<16x32xf32>
    %354 = arith.cmpf oge, %352, %353 : vector<16x32xf32>
    %cst_137 = arith.constant 2.000000e-01 : f32
    %355 = vector.broadcast %cst_137 : f32 to vector<16x32xf32>
    %356 = arith.mulf %355, %352 : vector<16x32xf32>
    %357 = arith.select %354, %352, %356 : vector<16x32xi1>, vector<16x32xf32>
    %358 = vector.broadcast %337 : vector<1x32xf32> to vector<16x32xf32>
    %359 = arith.mulf %357, %358 : vector<16x32xf32>
    %360 = vector.broadcast %339 : vector<1x32xf32> to vector<16x32xf32>
    %361 = arith.addf %359, %360 : vector<16x32xf32>
    %362 = arith.maximumf %350, %361 : vector<16x32xf32>
    %363 = vector.extract_strided_slice %335 {offsets = [32, 0], sizes = [16, 32], strides = [1, 1]} : vector<64x32xf32> to vector<16x32xf32>
    %364 = arith.addf %332, %363 : vector<16x32xf32>
    %cst_138 = arith.constant 0.000000e+00 : f32
    %365 = vector.broadcast %cst_138 : f32 to vector<16x32xf32>
    %366 = arith.cmpf oge, %364, %365 : vector<16x32xf32>
    %cst_139 = arith.constant 2.000000e-01 : f32
    %367 = vector.broadcast %cst_139 : f32 to vector<16x32xf32>
    %368 = arith.mulf %367, %364 : vector<16x32xf32>
    %369 = arith.select %366, %364, %368 : vector<16x32xi1>, vector<16x32xf32>
    %370 = vector.broadcast %337 : vector<1x32xf32> to vector<16x32xf32>
    %371 = arith.mulf %369, %370 : vector<16x32xf32>
    %372 = vector.broadcast %339 : vector<1x32xf32> to vector<16x32xf32>
    %373 = arith.addf %371, %372 : vector<16x32xf32>
    %374 = arith.maximumf %362, %373 : vector<16x32xf32>
    %375 = vector.extract_strided_slice %335 {offsets = [48, 0], sizes = [16, 32], strides = [1, 1]} : vector<64x32xf32> to vector<16x32xf32>
    %376 = arith.addf %332, %375 : vector<16x32xf32>
    %cst_140 = arith.constant 0.000000e+00 : f32
    %377 = vector.broadcast %cst_140 : f32 to vector<16x32xf32>
    %378 = arith.cmpf oge, %376, %377 : vector<16x32xf32>
    %cst_141 = arith.constant 2.000000e-01 : f32
    %379 = vector.broadcast %cst_141 : f32 to vector<16x32xf32>
    %380 = arith.mulf %379, %376 : vector<16x32xf32>
    %381 = arith.select %378, %376, %380 : vector<16x32xi1>, vector<16x32xf32>
    %382 = vector.broadcast %337 : vector<1x32xf32> to vector<16x32xf32>
    %383 = arith.mulf %381, %382 : vector<16x32xf32>
    %384 = vector.broadcast %339 : vector<1x32xf32> to vector<16x32xf32>
    %385 = arith.addf %383, %384 : vector<16x32xf32>
    %386 = arith.maximumf %374, %385 : vector<16x32xf32>
    %387 = tpu.concatenate %200, %262, %324, %386 in 1 : vector<16x32xf32>, vector<16x32xf32>, vector<16x32xf32>, vector<16x32xf32> -> vector<16x128xf32>
    %c0_142 = arith.constant 0 : index
    %c0_143 = arith.constant 0 : index
    %388 = vector.load %arg7[%c0_142, %c0_143] : memref<128x32xf32, #tpu.memory_space<vmem>>, vector<128x32xf32>
    %cst_144 = arith.constant dense<0.000000e+00> : vector<16x32xf32>
    %389 = tpu.matmul %387, %388, %cst_144 {dimension_numbers = #tpu.dot_dimension_numbers<[1], [0], [0], [1], [0, 0, 1, 1], [], []>} : vector<16x128xf32>, vector<128x32xf32>, vector<16x32xf32> -> vector<16x32xf32>
    %cst_145 = arith.constant 0.000000e+00 : f32
    %390 = vector.broadcast %cst_145 : f32 to vector<16x32xf32>
    %391 = arith.cmpf oge, %389, %390 : vector<16x32xf32>
    %cst_146 = arith.constant 2.000000e-01 : f32
    %392 = vector.broadcast %cst_146 : f32 to vector<16x32xf32>
    %393 = arith.mulf %392, %389 : vector<16x32xf32>
    %394 = arith.select %391, %389, %393 : vector<16x32xi1>, vector<16x32xf32>
    %c0_147 = arith.constant 0 : index
    %c0_148 = arith.constant 0 : index
    %395 = vector.load %arg8[%c0_147, %c0_148] : memref<1x32xf32, #tpu.memory_space<vmem>>, vector<1x32xf32>
    %396 = vector.broadcast %395 : vector<1x32xf32> to vector<16x32xf32>
    %397 = arith.mulf %394, %396 : vector<16x32xf32>
    %c0_149 = arith.constant 0 : index
    %c0_150 = arith.constant 0 : index
    %398 = vector.load %arg9[%c0_149, %c0_150] : memref<1x32xf32, #tpu.memory_space<vmem>>, vector<1x32xf32>
    %399 = vector.broadcast %398 : vector<1x32xf32> to vector<16x32xf32>
    %400 = arith.addf %397, %399 : vector<16x32xf32>
    %c0_151 = arith.constant 0 : index
    %c0_152 = arith.constant 0 : index
    %c0_153 = arith.constant 0 : index
    %401 = vector.load %arg10[%c0_151, %c0_152, %c0_153] : memref<1x16x32xf32, #tpu.memory_space<vmem>>, vector<1x16x32xf32>
    %402 = vector.shape_cast %401 : vector<1x16x32xf32> to vector<16x32xf32>
    %403 = vector.shape_cast %400 : vector<16x32xf32> to vector<1x16x32xf32>
    tpu.vector_store %arg10[%c0_151, %c0_152, %c0_153], %403 {strides = array<i32>} : memref<1x16x32xf32, #tpu.memory_space<vmem>>, vector<1x16x32xf32>,
    return
  }
  func.func @transform_0(%arg0: i32) -> (i32, i32, i32) {
    %c0_i32 = arith.constant 0 : i32
    %c0_i32_0 = arith.constant 0 : i32
    %c0_i32_1 = arith.constant 0 : i32
    return %arg0, %c0_i32, %c0_i32_0 : i32, i32, i32
  }
  func.func @transform_1(%arg0: i32) -> (i32, i32, i32, i32) {
    %c0_i32 = arith.constant 0 : i32
    %c0_i32_0 = arith.constant 0 : i32
    %c0_i32_1 = arith.constant 0 : i32
    %c0_i32_2 = arith.constant 0 : i32
    return %arg0, %c0_i32, %c0_i32_0, %c0_i32_1 : i32, i32, i32, i32
  }
  func.func @transform_2(%arg0: i32) -> (i32, i32, i32) {
    %c0_i32 = arith.constant 0 : i32
    %c0_i32_0 = arith.constant 0 : i32
    %c0_i32_1 = arith.constant 0 : i32
    %c0_i32_2 = arith.constant 0 : i32
    return %c0_i32, %c0_i32_0, %c0_i32_1 : i32, i32, i32
  }
  func.func @transform_3(%arg0: i32) -> (i32, i32, i32) {
    %c0_i32 = arith.constant 0 : i32
    %c0_i32_0 = arith.constant 0 : i32
    %c0_i32_1 = arith.constant 0 : i32
    %c0_i32_2 = arith.constant 0 : i32
    return %c0_i32, %c0_i32_0, %c0_i32_1 : i32, i32, i32
  }
  func.func @transform_4(%arg0: i32) -> (i32, i32, i32) {
    %c0_i32 = arith.constant 0 : i32
    %c0_i32_0 = arith.constant 0 : i32
    %c0_i32_1 = arith.constant 0 : i32
    %c0_i32_2 = arith.constant 0 : i32
    return %c0_i32, %c0_i32_0, %c0_i32_1 : i32, i32, i32
  }
  func.func @transform_5(%arg0: i32) -> (i32, i32, i32) {
    %c0_i32 = arith.constant 0 : i32
    %c0_i32_0 = arith.constant 0 : i32
    %c0_i32_1 = arith.constant 0 : i32
    %c0_i32_2 = arith.constant 0 : i32
    return %c0_i32, %c0_i32_0, %c0_i32_1 : i32, i32, i32
  }
  func.func @transform_6(%arg0: i32) -> (i32, i32) {
    %c0_i32 = arith.constant 0 : i32
    %c0_i32_0 = arith.constant 0 : i32
    %c0_i32_1 = arith.constant 0 : i32
    return %c0_i32, %c0_i32_0 : i32, i32
  }
  func.func @transform_7(%arg0: i32) -> (i32, i32) {
    %c0_i32 = arith.constant 0 : i32
    %c0_i32_0 = arith.constant 0 : i32
    %c0_i32_1 = arith.constant 0 : i32
    return %c0_i32, %c0_i32_0 : i32, i32
  }
  func.func @transform_8(%arg0: i32) -> (i32, i32) {
    %c0_i32 = arith.constant 0 : i32
    %c0_i32_0 = arith.constant 0 : i32
    %c0_i32_1 = arith.constant 0 : i32
    return %c0_i32, %c0_i32_0 : i32, i32
  }
  func.func @transform_9(%arg0: i32) -> (i32, i32, i32) {
    %c0_i32 = arith.constant 0 : i32
    %c0_i32_0 = arith.constant 0 : i32
    %c0_i32_1 = arith.constant 0 : i32
    return %arg0, %c0_i32, %c0_i32_0 : i32, i32, i32
  }
  func.func @transform_10(%arg0: i32) -> (i32, i32, i32) {
    %c0_i32 = arith.constant 0 : i32
    %c0_i32_0 = arith.constant 0 : i32
    %c0_i32_1 = arith.constant 0 : i32
    return %arg0, %c0_i32, %c0_i32_0 : i32, i32, i32
  }
}

</mosaic_0001>

<llo_original>
// kernel: tpu_custom_call.1
$region0: #{tpu_custom_call.1}
  #allocation0 [shape = 'u32[]', space=smem, size = 0x4, offset = 0x4, fixed_abs, tag = 'smem constant byte address 0x4 - core index']
  #allocation1 [shape = 'u32[144,128]{1,0:T(1,128)}', space=vmem, size = 0x12000, scoped, tag = 'internal scratch']
  #allocation2 [shape = 'bf16[64,16]{1,0:T(8,128)(2,1)}', space=vmem, size = 0x4000, scoped, tag = 'scratch operand']
  %s0 = inlined_call_operand.vmem [shape: f32[2,16,32], index: 0, kind: input, shape index: {}]
  %s1 = inlined_call_operand.hbm [shape: f32[2,3,1,16], index: 1, kind: input, shape index: {}]
  %s2 = inlined_call_operand.vmem [shape: f32[4,32,64], index: 2, kind: input, shape index: {}]
  %s3 = inlined_call_operand.vmem [shape: f32[4,1,32], index: 3, kind: input, shape index: {}]
  %s4 = inlined_call_operand.hbm [shape: f32[4,1,32], index: 4, kind: input, shape index: {}]
  %s5 = inlined_call_operand.vmem [shape: f32[4,1,32], index: 5, kind: input, shape index: {}]
  %s6 = inlined_call_operand.vmem [shape: f32[128,32], index: 6, kind: input, shape index: {}]
  %s7 = inlined_call_operand.vmem [shape: f32[1,32], index: 7, kind: input, shape index: {}]
  %s8 = inlined_call_operand.vmem [shape: f32[1,32], index: 8, kind: input, shape index: {}]
  %s9 = inlined_call_operand.hbm [shape: f32[2,16,32], index: 9, kind: output, shape index: {0}]
  %s10 = inlined_call_operand.vmem [shape: s32[2,16,4], index: 10, kind: output, shape index: {1}]
  %11 = xla_tuple %s9, %s10
  %s12 = sld [smem:[#allocation0]]
  $region85: #{tpu_custom_call.1} parent=0
    _
  %s14 = ssub.s32 1, %s12
  %s15 = scalar_select 0, %s14, %s12
  $region1: #{tpu_custom_call.1} parent=0
    #allocation3 [shape = 'u8[3072]{0}', space=vmem, size = 0xc00, scoped, tag = 'input window, operand 1']
    #allocation4 [shape = 's32[2]{0}', space=sflag, size = 0x8, scoped, tag = 'scoped memory for tpu_custom_call.1']
    #allocation5 [shape = 's32[2]{0}', space=sflag, size = 0x8, scoped, tag = 'scoped memory for tpu_custom_call.1']
    #allocation6 [shape = 'u8[2048]{0}', space=vmem, size = 0x800, scoped, tag = 'input window, operand 4, single buffered']
    #allocation7 [shape = 's32[1]{0}', space=sflag, size = 0x4, scoped, tag = 'scoped memory for tpu_custom_call.1']
    #allocation8 [shape = 'u8[16384]{0}', space=vmem, size = 0x4000, scoped, tag = 'output window, operand 0']
    %16 = vsyncpa [#allocation4], 0
    %s17 = scalar_lea.sflag [#allocation4], 1
    %18 = vsyncpa %s17, 0
    %19 = vsyncpa [#allocation7], 0
    %20 = vsyncpa [#allocation5], 0
    %s21 = scalar_lea.sflag [#allocation5], 1
    %22 = vsyncpa %s21, 0
    loop: start=0, step=1, limit=4
    $region2: #{tpu_custom_call.1} parent=1 // loop_pre_header
      _
    $region3: #{tpu_custom_call.1} parent=1 // loop_header
      %s24 = sphi 0, %s28
      %p25 = scmp.ge.s32.totalorder %s24, 4
      %s34 = sphi 0, %s36
      %s37 = sphi 0, %s34
      %s38 = sphi 0, %s37
      %s54 = sphi 0, %s38
      %s60 = sphi 0, %s62
      %s63 = sphi 0, %s60
      %s64 = sphi 0, %s63
      %s80 = sphi 0, %s64
      %s84 = sphi 0, %s84
      %s86 = sphi 0, %s84
      %s87 = sphi 0, %s86
      %s101 = sphi 0, %s87
      %s105 = sphi 0, %s105
      %s107 = sphi 0, %s105
      %s108 = sphi 0, %s107
      %s122 = sphi 0, %s108
      %s126 = sphi 0, %s126
      %s128 = sphi 0, %s126
      %s129 = sphi 0, %s128
      %s143 = sphi 0, %s129
      %s147 = sphi 0, %s147
      %s149 = sphi 0, %s147
      %s150 = sphi 0, %s149
      %s164 = sphi 0, %s150
      %s168 = sphi 0, %s168
      %s170 = sphi 0, %s168
      %s171 = sphi 0, %s170
      %s185 = sphi 0, %s171
      %s189 = sphi 0, %s189
      %s191 = sphi 0, %s189
      %s192 = sphi 0, %s191
      %s206 = sphi 0, %s192
      %s210 = sphi 0, %s210
      %s212 = sphi 0, %s210
      %s213 = sphi 0, %s212
      %s227 = sphi 0, %s213
      %s233 = sphi 0, %s235
      %s236 = sphi 0, %s233
      %s237 = sphi 0, %s236
      %s253 = sphi 0, %s237
      %s259 = sphi 0, %s261
      %s262 = sphi 0, %s259
      %s263 = sphi 0, %s262
      %s279 = sphi 0, %s263
    $region4: #{tpu_custom_call.1} parent=1 // loop_header_branch
      %27 = sbr.rel (%p25) target = $region8
    $region5: #{tpu_custom_call.1} parent=1 // loop_body
      %s29 = ssub.s32 %s24, 1
      %s30 = ssub.s32 %s24, 2
      %s31 = sadd.s32 %s24, 1
      %s32 = ssub.s32 %s24, %s31
      %p33 = scmp.eq.s32.totalorder %s32, 0
      %s35 = sadd.s32 %s34, 1
      %s36 = scalar_select %p33, %s34, %s35
      %p39 = pneg %p33
      %p40 = scmp.eq.s32.totalorder %s24, 1
      %p41 = por %p39, %p40
      %p42 = scmp.ne.s32.totalorder %s34, %s37
      %p43 = scmp.eq.s32.totalorder %s24, 0
      %p44 = por %p42, %p43
      %p45 = scmp.ne.s32.totalorder %s34, %s37
      %p46 = scmp.eq.s32.totalorder %s29, 1
      %p47 = por %p45, %p46
      %p48 = scmp.ne.s32.totalorder %s37, %s38
      %p49 = scmp.eq.s32.totalorder %s29, 0
      %p50 = por %p48, %p49
      %p51 = scmp.ne.s32.totalorder %s37, %s38
      %p52 = scmp.eq.s32.totalorder %s30, 1
      %p53 = por %p51, %p52
      %p55 = scmp.ne.s32.totalorder %s38, %s54
      %p56 = scmp.eq.s32.totalorder %s30, 0
      %p57 = por %p55, %p56
      %s58 = ssub.s32 %s24, %s31
      %p59 = scmp.eq.s32.totalorder %s58, 0
      %s61 = sadd.s32 %s60, 1
      %s62 = scalar_select %p59, %s60, %s61
      %p65 = pneg %p59
      %p66 = scmp.eq.s32.totalorder %s24, 1
      %p67 = por %p65, %p66
      %p68 = scmp.ne.s32.totalorder %s60, %s63
      %p69 = scmp.eq.s32.totalorder %s24, 0
      %p70 = por %p68, %p69
      %p71 = scmp.ne.s32.totalorder %s60, %s63
      %p72 = scmp.eq.s32.totalorder %s29, 1
      %p73 = por %p71, %p72
      %p74 = scmp.ne.s32.totalorder %s63, %s64
      %p75 = scmp.eq.s32.totalorder %s29, 0
      %p76 = por %p74, %p75
      %p77 = scmp.ne.s32.totalorder %s63, %s64
      %p78 = scmp.eq.s32.totalorder %s30, 1
      %p79 = por %p77, %p78
      %p81 = scmp.ne.s32.totalorder %s64, %s80
      %p82 = scmp.eq.s32.totalorder %s30, 0
      %p83 = por %p81, %p82
      %s85 = sadd.s32 %s84, 1
      %p88 = scmp.eq.s32.totalorder %s24, 1
      %p89 = scmp.ne.s32.totalorder %s84, %s86
      %p90 = scmp.eq.s32.totalorder %s24, 0
      %p91 = por %p89, %p90
      %p92 = scmp.ne.s32.totalorder %s84, %s86
      %p93 = scmp.eq.s32.totalorder %s29, 1
      %p94 = por %p92, %p93
      %p95 = scmp.ne.s32.totalorder %s86, %s87
      %p96 = scmp.eq.s32.totalorder %s29, 0
      %p97 = por %p95, %p96
      %p98 = scmp.ne.s32.totalorder %s86, %s87
      %p99 = scmp.eq.s32.totalorder %s30, 1
      %p100 = por %p98, %p99
      %p102 = scmp.ne.s32.totalorder %s87, %s101
      %p103 = scmp.eq.s32.totalorder %s30, 0
      %p104 = por %p102, %p103
      %s106 = sadd.s32 %s105, 1
      %p109 = scmp.eq.s32.totalorder %s24, 1
      %p110 = scmp.ne.s32.totalorder %s105, %s107
      %p111 = scmp.eq.s32.totalorder %s24, 0
      %p112 = por %p110, %p111
      %p113 = scmp.ne.s32.totalorder %s105, %s107
      %p114 = scmp.eq.s32.totalorder %s29, 1
      %p115 = por %p113, %p114
      %p116 = scmp.ne.s32.totalorder %s107, %s108
      %p117 = scmp.eq.s32.totalorder %s29, 0
      %p118 = por %p116, %p117
      %p119 = scmp.ne.s32.totalorder %s107, %s108
      %p120 = scmp.eq.s32.totalorder %s30, 1
      %p121 = por %p119, %p120
      %p123 = scmp.ne.s32.totalorder %s108, %s122
      %p124 = scmp.eq.s32.totalorder %s30, 0
      %p125 = por %p123, %p124
      %s127 = sadd.s32 %s126, 1
      %p130 = scmp.eq.s32.totalorder %s24, 1
      %p131 = scmp.ne.s32.totalorder %s126, %s128
      %p132 = scmp.eq.s32.totalorder %s24, 0
      %p133 = por %p131, %p132
      %p134 = scmp.ne.s32.totalorder %s126, %s128
      %p135 = scmp.eq.s32.totalorder %s29, 1
      %p136 = por %p134, %p135
      %p137 = scmp.ne.s32.totalorder %s128, %s129
      %p138 = scmp.eq.s32.totalorder %s29, 0
      %p139 = por %p137, %p138
      %p140 = scmp.ne.s32.totalorder %s128, %s129
      %p141 = scmp.eq.s32.totalorder %s30, 1
      %p142 = por %p140, %p141
      %p144 = scmp.ne.s32.totalorder %s129, %s143
      %p145 = scmp.eq.s32.totalorder %s30, 0
      %p146 = por %p144, %p145
      %s148 = sadd.s32 %s147, 1
      %p151 = scmp.eq.s32.totalorder %s24, 1
      %p152 = scmp.ne.s32.totalorder %s147, %s149
      %p153 = scmp.eq.s32.totalorder %s24, 0
      %p154 = por %p152, %p153
      %p155 = scmp.ne.s32.totalorder %s147, %s149
      %p156 = scmp.eq.s32.totalorder %s29, 1
      %p157 = por %p155, %p156
      %p158 = scmp.ne.s32.totalorder %s149, %s150
      %p159 = scmp.eq.s32.totalorder %s29, 0
      %p160 = por %p158, %p159
      %p161 = scmp.ne.s32.totalorder %s149, %s150
      %p162 = scmp.eq.s32.totalorder %s30, 1
      %p163 = por %p161, %p162
      %p165 = scmp.ne.s32.totalorder %s150, %s164
      %p166 = scmp.eq.s32.totalorder %s30, 0
      %p167 = por %p165, %p166
      %s169 = sadd.s32 %s168, 1
      %p172 = scmp.eq.s32.totalorder %s24, 1
      %p173 = scmp.ne.s32.totalorder %s168, %s170
      %p174 = scmp.eq.s32.totalorder %s24, 0
      %p175 = por %p173, %p174
      %p176 = scmp.ne.s32.totalorder %s168, %s170
      %p177 = scmp.eq.s32.totalorder %s29, 1
      %p178 = por %p176, %p177
      %p179 = scmp.ne.s32.totalorder %s170, %s171
      %p180 = scmp.eq.s32.totalorder %s29, 0
      %p181 = por %p179, %p180
      %p182 = scmp.ne.s32.totalorder %s170, %s171
      %p183 = scmp.eq.s32.totalorder %s30, 1
      %p184 = por %p182, %p183
      %p186 = scmp.ne.s32.totalorder %s171, %s185
      %p187 = scmp.eq.s32.totalorder %s30, 0
      %p188 = por %p186, %p187
      %s190 = sadd.s32 %s189, 1
      %p193 = scmp.eq.s32.totalorder %s24, 1
      %p194 = scmp.ne.s32.totalorder %s189, %s191
      %p195 = scmp.eq.s32.totalorder %s24, 0
      %p196 = por %p194, %p195
      %p197 = scmp.ne.s32.totalorder %s189, %s191
      %p198 = scmp.eq.s32.totalorder %s29, 1
      %p199 = por %p197, %p198
      %p200 = scmp.ne.s32.totalorder %s191, %s192
      %p201 = scmp.eq.s32.totalorder %s29, 0
      %p202 = por %p200, %p201
      %p203 = scmp.ne.s32.totalorder %s191, %s192
      %p204 = scmp.eq.s32.totalorder %s30, 1
      %p205 = por %p203, %p204
      %p207 = scmp.ne.s32.totalorder %s192, %s206
      %p208 = scmp.eq.s32.totalorder %s30, 0
      %p209 = por %p207, %p208
      %s211 = sadd.s32 %s210, 1
      %p214 = scmp.eq.s32.totalorder %s24, 1
      %p215 = scmp.ne.s32.totalorder %s210, %s212
      %p216 = scmp.eq.s32.totalorder %s24, 0
      %p217 = por %p215, %p216
      %p218 = scmp.ne.s32.totalorder %s210, %s212
      %p219 = scmp.eq.s32.totalorder %s29, 1
      %p220 = por %p218, %p219
      %p221 = scmp.ne.s32.totalorder %s212, %s213
      %p222 = scmp.eq.s32.totalorder %s29, 0
      %p223 = por %p221, %p222
      %p224 = scmp.ne.s32.totalorder %s212, %s213
      %p225 = scmp.eq.s32.totalorder %s30, 1
      %p226 = por %p224, %p225
      %p228 = scmp.ne.s32.totalorder %s213, %s227
      %p229 = scmp.eq.s32.totalorder %s30, 0
      %p230 = por %p228, %p229
      %s231 = ssub.s32 %s24, %s31
      %p232 = scmp.eq.s32.totalorder %s231, 0
      %s234 = sadd.s32 %s233, 1
      %s235 = scalar_select %p232, %s233, %s234
      %p238 = pneg %p232
      %p239 = scmp.eq.s32.totalorder %s24, 1
      %p240 = por %p238, %p239
      %p241 = scmp.ne.s32.totalorder %s233, %s236
      %p242 = scmp.eq.s32.totalorder %s24, 0
      %p243 = por %p241, %p242
      %p244 = scmp.ne.s32.totalorder %s233, %s236
      %p245 = scmp.eq.s32.totalorder %s29, 1
      %p246 = por %p244, %p245
      %p247 = scmp.ne.s32.totalorder %s236, %s237
      %p248 = scmp.eq.s32.totalorder %s29, 0
      %p249 = por %p247, %p248
      %p250 = scmp.ne.s32.totalorder %s236, %s237
      %p251 = scmp.eq.s32.totalorder %s30, 1
      %p252 = por %p250, %p251
      %p254 = scmp.ne.s32.totalorder %s237, %s253
      %p255 = scmp.eq.s32.totalorder %s30, 0
      %p256 = por %p254, %p255
      %s257 = ssub.s32 %s24, %s31
      %p258 = scmp.eq.s32.totalorder %s257, 0
      %s260 = sadd.s32 %s259, 1
      %s261 = scalar_select %p258, %s259, %s260
      %p264 = pneg %p258
      %p265 = scmp.eq.s32.totalorder %s24, 1
      %p266 = por %p264, %p265
      %p267 = scmp.ne.s32.totalorder %s259, %s262
      %p268 = scmp.eq.s32.totalorder %s24, 0
      %p269 = por %p267, %p268
      %p270 = scmp.ne.s32.totalorder %s259, %s262
      %p271 = scmp.eq.s32.totalorder %s29, 1
      %p272 = por %p270, %p271
      %p273 = scmp.ne.s32.totalorder %s262, %s263
      %p274 = scmp.eq.s32.totalorder %s29, 0
      %p275 = por %p273, %p274
      %p276 = scmp.ne.s32.totalorder %s262, %s263
      %p277 = scmp.eq.s32.totalorder %s30, 1
      %p278 = por %p276, %p277
      %p280 = scmp.ne.s32.totalorder %s263, %s279
      %p281 = scmp.eq.s32.totalorder %s30, 0
      %p282 = por %p280, %p281
      %p283 = scmp.le.s32.totalorder 1, %s24
      %p284 = scmp.lt.s32.totalorder %s24, 3
      %p285 = pnand %p283, %p284
      %p286 = pneg %p285
      // Predicated region
      $region9: #{tpu_custom_call.1} parent=5 // pred_check
        _
      $region10: #{tpu_custom_call.1} parent=5 // pred_check_branch
        %288 = sbr.rel (%p285) target = $region12
      $region11: #{tpu_custom_call.1} parent=5 // pred_region
        %s289 = ssub.s32 %s24, 1
        // Predicated region
        $region13: #{tpu_custom_call.1} parent=11 // pred_check
          %p290 = pneg %p97
        $region14: #{tpu_custom_call.1} parent=11 // pred_check_branch
          %292 = sbr.rel (%p290) target = $region16
        $region15: #{tpu_custom_call.1} parent=11 // pred_region
          _
        $region16: #{tpu_custom_call.1} parent=11 // pred_fallthru
          _
        // Predicated region
        $region17: #{tpu_custom_call.1} parent=11 // pred_check
          %p293 = pneg %p118
        $region18: #{tpu_custom_call.1} parent=11 // pred_check_branch
          %295 = sbr.rel (%p293) target = $region20
        $region19: #{tpu_custom_call.1} parent=11 // pred_region
          _
        $region20: #{tpu_custom_call.1} parent=11 // pred_fallthru
          _
        // Predicated region
        $region21: #{tpu_custom_call.1} parent=11 // pred_check
          %p296 = pneg %p139
        $region22: #{tpu_custom_call.1} parent=11 // pred_check_branch
          %298 = sbr.rel (%p296) target = $region24
        $region23: #{tpu_custom_call.1} parent=11 // pred_region
          %s300 = ssub.s32 64, 64
          %301 = vsyncadd [#allocation7], %s300
          %s302 = sshll.u32 [#allocation6], 4
          %s303 = int_to_ptr.vmem [resolvable:$true] %s302
          %308 = dma.hbm_to_vmem [thread:$0]  %s4, 64, %s303, [#allocation7], 16, 16, 1
        $region24: #{tpu_custom_call.1} parent=11 // pred_fallthru
          _
        // Predicated region
        $region25: #{tpu_custom_call.1} parent=11 // pred_check
          %p309 = pneg %p160
        $region26: #{tpu_custom_call.1} parent=11 // pred_check_branch
          %311 = sbr.rel (%p309) target = $region28
        $region27: #{tpu_custom_call.1} parent=11 // pred_region
          _
        $region28: #{tpu_custom_call.1} parent=11 // pred_fallthru
          _
        // Predicated region
        $region29: #{tpu_custom_call.1} parent=11 // pred_check
          %p312 = pneg %p181
        $region30: #{tpu_custom_call.1} parent=11 // pred_check_branch
          %314 = sbr.rel (%p312) target = $region32
        $region31: #{tpu_custom_call.1} parent=11 // pred_region
          _
        $region32: #{tpu_custom_call.1} parent=11 // pred_fallthru
          _
        // Predicated region
        $region33: #{tpu_custom_call.1} parent=11 // pred_check
          %p315 = pneg %p202
        $region34: #{tpu_custom_call.1} parent=11 // pred_check_branch
          %317 = sbr.rel (%p315) target = $region36
        $region35: #{tpu_custom_call.1} parent=11 // pred_region
          _
        $region36: #{tpu_custom_call.1} parent=11 // pred_fallthru
          _
        // Predicated region
        $region37: #{tpu_custom_call.1} parent=11 // pred_check
          %p318 = pneg %p223
        $region38: #{tpu_custom_call.1} parent=11 // pred_check_branch
          %320 = sbr.rel (%p318) target = $region40
        $region39: #{tpu_custom_call.1} parent=11 // pred_region
          _
        $region40: #{tpu_custom_call.1} parent=11 // pred_fallthru
          _
      $region12: #{tpu_custom_call.1} parent=5 // pred_fallthru
        _
      %p321 = scmp.lt.s32.totalorder %s24, 2
      // Predicated region
      $region41: #{tpu_custom_call.1} parent=5 // pred_check
        %p322 = pneg %p321
      $region42: #{tpu_custom_call.1} parent=5 // pred_check_branch
        %324 = sbr.rel (%p322) target = $region44
      $region43: #{tpu_custom_call.1} parent=5 // pred_region
        // Predicated region
        $region45: #{tpu_custom_call.1} parent=43 // pred_check
          %p325 = pneg %p44
        $region46: #{tpu_custom_call.1} parent=43 // pred_check_branch
          %327 = sbr.rel (%p325) target = $region48
        $region47: #{tpu_custom_call.1} parent=43 // pred_region
          %p328 = scmp.lt.s32.totalorder %s24, 1
          %s329 = scalar_select %p328, %s24, 1
          %s330 = smul.addr %s329, 2
          %s331 = smul.addr %s330, 8
          %s332 = scalar_lea.vmem %s0, %s331
        $region48: #{tpu_custom_call.1} parent=43 // pred_fallthru
          _
        // Predicated region
        $region49: #{tpu_custom_call.1} parent=43 // pred_check
          %p333 = pneg %p70
        $region50: #{tpu_custom_call.1} parent=43 // pred_check_branch
          %335 = sbr.rel (%p333) target = $region52
        $region51: #{tpu_custom_call.1} parent=43 // pred_region
          %s336 = sand.u32 %s60, 1
          %s337 = scalar_lea.sflag [#allocation4], %s336
          %s338 = sand.u32 %s60, 1
          %s339 = smul.addr %s338, 3
          %s340 = scalar_lea.vmem [#allocation3], %s339
          %s342 = ssub.s32 48, 48
          %343 = vsyncadd %s337, %s342
          %s344 = smul.addr %s24, 3
          %s345 = smul.addr %s344, 16
          %s346 = scalar_lea.hbm %s1, %s345
          %s347 = sshll.u32 %s340, 4
          %s348 = int_to_ptr.vmem [resolvable:$true] %s347
          %353 = dma.hbm_to_vmem [thread:$0]  %s346, 48, %s348, %s337, 16, 16, 1
        $region52: #{tpu_custom_call.1} parent=43 // pred_fallthru
          _
      $region44: #{tpu_custom_call.1} parent=5 // pred_fallthru
        _
      %p354 = scmp.le.s32.totalorder 1, %s24
      %p355 = scmp.lt.s32.totalorder %s24, 3
      %p356 = pnand %p354, %p355
      %p357 = pneg %p356
      // Predicated region
      $region53: #{tpu_custom_call.1} parent=5 // pred_check
        _
      $region54: #{tpu_custom_call.1} parent=5 // pred_check_branch
        %359 = sbr.rel (%p356) target = $region56
      $region55: #{tpu_custom_call.1} parent=5 // pred_region
        %s360 = ssub.s32 %s24, 1
        %s361 = sand.u32 %s63, 1
        %s362 = scalar_lea.sflag [#allocation4], %s361
        %s363 = sand.u32 %s63, 1
        %s364 = smul.addr %s363, 3
        %s365 = scalar_lea.vmem [#allocation3], %s364
        // Predicated region
        $region57: #{tpu_custom_call.1} parent=55 // pred_check
          %p366 = pneg %p76
        $region58: #{tpu_custom_call.1} parent=55 // pred_check_branch
          %368 = sbr.rel (%p366) target = $region60
        $region59: #{tpu_custom_call.1} parent=55 // pred_region
          %369 = dma.done %s362, 48
        $region60: #{tpu_custom_call.1} parent=55 // pred_fallthru
          _
        // Predicated region
        $region61: #{tpu_custom_call.1} parent=55 // pred_check
          %p370 = pneg %p139
        $region62: #{tpu_custom_call.1} parent=55 // pred_check_branch
          %372 = sbr.rel (%p370) target = $region64
        $region63: #{tpu_custom_call.1} parent=55 // pred_region
          %373 = dma.done [#allocation7], 64
        $region64: #{tpu_custom_call.1} parent=55 // pred_fallthru
          _
        %p374 = scmp.lt.s32.totalorder %s29, 1
        %s375 = scalar_select %p374, %s29, 1
        %s376 = smul.addr %s375, 2
        %s377 = smul.addr %s376, 8
        %s378 = scalar_lea.vmem %s0, %s377
        %p379 = pneg %p50
        %p380 = pneg %p47
        %s381 = sand.u32 %s63, 1
        %s382 = scalar_lea.sflag [#allocation4], %s381
        %s383 = sand.u32 %s63, 1
        %s384 = smul.addr %s383, 3
        %s385 = scalar_lea.vmem [#allocation3], %s384
        %p386 = pneg %p76
        %p387 = pneg %p73
        %p388 = pneg %p97
        %p389 = pneg %p94
        %p390 = pneg %p118
        %p391 = pneg %p115
        %p392 = pneg %p139
        %p393 = pneg %p136
        %p394 = pneg %p160
        %p395 = pneg %p157
        %p396 = pneg %p181
        %p397 = pneg %p178
        %p398 = pneg %p202
        %p399 = pneg %p199
        %p400 = pneg %p223
        %p401 = pneg %p220
        %p402 = pneg %p249
        %p403 = pneg %p246
        %s404 = sand.u32 %s236, 1
        %s405 = scalar_lea.sflag [#allocation5], %s404
        %s406 = sand.u32 %s236, 1
        %s407 = smul.addr %s406, 16
        %s408 = scalar_lea.vmem [#allocation8], %s407
        %p409 = pneg %p275
        %p410 = pneg %p272
        %p411 = scmp.lt.s32.totalorder %s29, 1
        %s412 = scalar_select %p411, %s29, 1
        %s413 = smul.addr %s412, 2
        %s414 = smul.addr %s413, 8
        %s415 = scalar_lea.vmem %s10, %s414
        %p416 = scmp.lt.s32.totalorder %s29, 1
        %s417 = scalar_select %p416, %s29, 1
        %s418 = smul.addr %s417, 2
        %s419 = smul.addr %s418, 8
        %s420 = scalar_lea.vmem %s0, %s419
        %p421 = scmp.lt.s32.totalorder %s29, 1
        %s422 = scalar_select %p421, %s29, 1
        %s423 = smul.addr %s422, 2
        %s424 = smul.addr %s423, 8
        %s425 = scalar_lea.vmem %s10, %s424
        %v427 = vld [vmem:[%s420] sm:$0xff]
        %v428 = vld [vmem:[%s420 + $0x8] sm:$0xff]
        %v429 = vld [vmem:[%s365] sm:$0x1]
        %431 = vset.pattern.permute.xlu0 0
        %432 = vperm.xlu0 %431, %v427
        %v433 = vpop.permute.xlu0 %432
        %436 = vset.pattern.permute.xlu0 0
        %437 = vperm.xlu0 %436, %v428
        %v438 = vpop.permute.xlu0 %437
        %v441 = vlaneseq
        %v442 = vshrl.u32 %v441, 7
        %v443 = vsub.s32 0, %v442
        %v444 = vrot.slane %v429, %v443
        %v446 = vsub.f32 %v433, %v444
        %v447 = vsub.f32 %v438, %v444
        %v448 = vmul.f32 %v446, %v446
        %v449 = vmul.f32 %v447, %v447
        %s450 = scalar_lea.vmem %s365, 1 [#allocation3]
        %v451 = vld [vmem:[%s450] sm:$0x1]
        %452 = vset.pattern.permute.xlu0 1
        %453 = vperm.xlu0 %452, %v427
        %v454 = vpop.permute.xlu0 %453
        %456 = vset.pattern.permute.xlu0 1
        %457 = vperm.xlu0 %456, %v428
        %v458 = vpop.permute.xlu0 %457
        %v461 = vlaneseq
        %v462 = vshrl.u32 %v461, 7
        %v463 = vsub.s32 0, %v462
        %v464 = vrot.slane %v451, %v463
        %v466 = vsub.f32 %v454, %v464
        %v467 = vsub.f32 %v458, %v464
        %v468 = vmul.f32 %v466, %v466
        %v469 = vmul.f32 %v467, %v467
        %v470 = vadd.f32 %v448, %v468
        %v471 = vadd.f32 %v449, %v469
        %s472 = scalar_lea.vmem %s365, 2 [#allocation3]
        %v473 = vld [vmem:[%s472] sm:$0x1]
        %474 = vset.pattern.permute.xlu0 2
        %475 = vperm.xlu0 %474, %v427
        %v476 = vpop.permute.xlu0 %475
        %478 = vset.pattern.permute.xlu0 2
        %479 = vperm.xlu0 %478, %v428
        %v480 = vpop.permute.xlu0 %479
        %v483 = vlaneseq
        %v484 = vshrl.u32 %v483, 7
        %v485 = vsub.s32 0, %v484
        %v486 = vrot.slane %v473, %v485
        %v488 = vsub.f32 %v476, %v486
        %v489 = vsub.f32 %v480, %v486
        %v490 = vmul.f32 %v488, %v488
        %v491 = vmul.f32 %v489, %v489
        %v492 = vadd.f32 %v470, %v490
        %v493 = vadd.f32 %v471, %v491
        %vm494 = vcmp.lt.f32.partialorder %v492, 0.16
        %vm495 = vcmp.lt.f32.partialorder %v493, 0.16
        %v496 = vsel %vm494, 1, 0
        %v497 = vsel %vm495, 1, 0
        %v498 = vcvt.s32.f32 %v496
        %v499 = vcvt.s32.f32 %v497
        %vm500 = vcmask 130048
        %v501 = vsel %vm500, %v498, 0.0
        %502 = vadd.xlane.f32.xlu0 %v501
        %v503 = vpop.xlane.xlu0 %502
        %v504 = vsel %vm500, %v499, 0.0
        %505 = vadd.xlane.f32.xlu0 %v504
        %v506 = vpop.xlane.xlu0 %505
        %v507 = vlaneseq
        %v508 = vand.u32 %v507, 127
        %v509 = vcvt.s32.f32 %v508
        %v510 = vsel %vm494, %v509, 16.0
        %v511 = vsel %vm495, %v509, 16.0
        %v512 = vsel %vm500, %v510, inf
        %513 = vmin.xlane.f32.xlu0 %v512
        %v514 = vpop.xlane.xlu0 %513
        %v515 = vsel %vm500, %v511, inf
        %516 = vmin.xlane.f32.xlu0 %v515
        %v517 = vpop.xlane.xlu0 %516
        %vm518 = vcmp.eq.f32.partialorder %v509, %v514
        %vm519 = vcmp.eq.f32.partialorder %v509, %v517
        %v520 = vsel %vm518, 1.0, 0.0
        %v521 = vsel %vm519, 1.0, 0.0
        %v522 = vpack.c.bf16 %v521, %v520
        %v524 = vunpack.c.l.b16 %v522
        %v525 = vunpack.c.h.b16 %v522
        %v526 = vpack.c.b16 %v524, %v524
        %v527 = vpack.c.b16 %v525, %v525
        %vm530 = vcmask 125952
        %531 = vst.msk [vmem:[#allocation2] sm:$0xf] %vm530, %v526
        %532 = vst.msk [vmem:[#allocation2 + $0x4] sm:$0xf] %vm530, %v527
        %vm533 = vcmp.eq.f32.partialorder %v509, 0.0
        %v534 = vsel %vm533, 1.0, 0.0
        %v535 = vmul.f32 %v514, %v534
        %v536 = vmul.f32 %v517, %v534
        %v537 = vadd.f32 %v535, 0.0
        %v538 = vadd.f32 %v536, 0.0
        %v539 = vsel %vm518, 16.0, %v510
        %v540 = vsel %vm519, 16.0, %v511
        %v541 = vsel %vm500, %v539, inf
        %542 = vmin.xlane.f32.xlu0 %v541
        %v543 = vpop.xlane.xlu0 %542
        %v544 = vsel %vm500, %v540, inf
        %545 = vmin.xlane.f32.xlu0 %v544
        %v546 = vpop.xlane.xlu0 %545
        %vm547 = vcmp.eq.f32.partialorder %v509, %v543
        %vm548 = vcmp.eq.f32.partialorder %v509, %v546
        %v549 = vsel %vm547, 1.0, 0.0
        %v550 = vsel %vm548, 1.0, 0.0
        %vm551 = vcmp.gt.f32.partialorder %v503, 1.5
        %vm552 = vcmp.gt.f32.partialorder %v506, 1.5
        %v553 = vsel %vm551, 1, 0
        %v554 = vsel %vm552, 1, 0
        %vm555 = vcmp.eq.s32.totalorder %v553, 1
        %vm556 = vcmp.eq.s32.totalorder %v554, 1
        %v557 = vsel %vm555, %v549, %v520
        %v558 = vsel %vm556, %v550, %v521
        %v559 = vsel %vm551, %v543, %v514
        %v560 = vsel %vm552, %v546, %v517
        %v561 = vpack.c.bf16 %v558, %v557
        %v563 = vunpack.c.l.b16 %v561
        %v564 = vunpack.c.h.b16 %v561
        %v565 = vpack.c.b16 %v563, %v563
        %v566 = vpack.c.b16 %v564, %v564
        %569 = vst.msk [vmem:[#allocation2 + $0x8] sm:$0xf] %vm530, %v565
        %570 = vst.msk [vmem:[#allocation2 + $0xc] sm:$0xf] %vm530, %v566
        %vm571 = vcmp.eq.f32.partialorder %v509, 1.0
        %v572 = vsel %vm571, 1.0, 0.0
        %v573 = vmul.f32 %v559, %v572
        %v574 = vmul.f32 %v560, %v572
        %v575 = vadd.f32 %v537, %v573
        %v576 = vadd.f32 %v538, %v574
        %v577 = vsel %vm547, 16.0, %v539
        %v578 = vsel %vm548, 16.0, %v540
        %v579 = vsel %vm500, %v577, inf
        %580 = vmin.xlane.f32.xlu0 %v579
        %v581 = vpop.xlane.xlu0 %580
        %v582 = vsel %vm500, %v578, inf
        %583 = vmin.xlane.f32.xlu0 %v582
        %v584 = vpop.xlane.xlu0 %583
        %vm585 = vcmp.eq.f32.partialorder %v509, %v581
        %vm586 = vcmp.eq.f32.partialorder %v509, %v584
        %v587 = vsel %vm585, 1.0, 0.0
        %v588 = vsel %vm586, 1.0, 0.0
        %vm589 = vcmp.gt.f32.partialorder %v503, 2.5
        %vm590 = vcmp.gt.f32.partialorder %v506, 2.5
        %v591 = vsel %vm589, 1, 0
        %v592 = vsel %vm590, 1, 0
        %vm593 = vcmp.eq.s32.totalorder %v591, 1
        %vm594 = vcmp.eq.s32.totalorder %v592, 1
        %v595 = vsel %vm593, %v587, %v520
        %v596 = vsel %vm594, %v588, %v521
        %v597 = vsel %vm589, %v581, %v514
        %v598 = vsel %vm590, %v584, %v517
        %v599 = vpack.c.bf16 %v596, %v595
        %v601 = vunpack.c.l.b16 %v599
        %v602 = vunpack.c.h.b16 %v599
        %v603 = vpack.c.b16 %v601, %v601
        %v604 = vpack.c.b16 %v602, %v602
        %607 = vst.msk [vmem:[#allocation2 + $0x10] sm:$0xf] %vm530, %v603
        %608 = vst.msk [vmem:[#allocation2 + $0x14] sm:$0xf] %vm530, %v604
        %vm609 = vcmp.eq.f32.partialorder %v509, 2.0
        %v610 = vsel %vm609, 1.0, 0.0
        %v611 = vmul.f32 %v597, %v610
        %v612 = vmul.f32 %v598, %v610
        %v613 = vadd.f32 %v575, %v611
        %v614 = vadd.f32 %v576, %v612
        %v615 = vsel %vm585, 16.0, %v577
        %v616 = vsel %vm586, 16.0, %v578
        %v617 = vsel %vm500, %v615, inf
        %618 = vmin.xlane.f32.xlu0 %v617
        %v619 = vpop.xlane.xlu0 %618
        %v620 = vsel %vm500, %v616, inf
        %621 = vmin.xlane.f32.xlu0 %v620
        %v622 = vpop.xlane.xlu0 %621
        %vm623 = vcmp.eq.f32.partialorder %v509, %v619
        %vm624 = vcmp.eq.f32.partialorder %v509, %v622
        %v625 = vsel %vm623, 1.0, 0.0
        %v626 = vsel %vm624, 1.0, 0.0
        %vm627 = vcmp.gt.f32.partialorder %v503, 3.5
        %vm628 = vcmp.gt.f32.partialorder %v506, 3.5
        %v629 = vsel %vm627, 1, 0
        %v630 = vsel %vm628, 1, 0
        %vm631 = vcmp.eq.s32.totalorder %v629, 1
        %vm632 = vcmp.eq.s32.totalorder %v630, 1
        %v633 = vsel %vm631, %v625, %v520
        %v634 = vsel %vm632, %v626, %v521
        %v635 = vsel %vm627, %v619, %v514
        %v636 = vsel %vm628, %v622, %v517
        %v637 = vpack.c.bf16 %v634, %v633
        %v639 = vunpack.c.l.b16 %v637
        %v640 = vunpack.c.h.b16 %v637
        %v641 = vpack.c.b16 %v639, %v639
        %v642 = vpack.c.b16 %v640, %v640
        %645 = vst.msk [vmem:[#allocation2 + $0x18] sm:$0xf] %vm530, %v641
        %646 = vst.msk [vmem:[#allocation2 + $0x1c] sm:$0xf] %vm530, %v642
        %vm647 = vcmp.eq.f32.partialorder %v509, 3.0
        %v648 = vsel %vm647, 1.0, 0.0
        %v649 = vmul.f32 %v635, %v648
        %v650 = vmul.f32 %v636, %v648
        %v651 = vadd.f32 %v613, %v649
        %v652 = vadd.f32 %v614, %v650
        %v653 = vcvt.f32.s32.to.zero.pseudo %v651
        %v654 = vcvt.f32.s32.to.zero.pseudo %v652
        %vm655 = vcmask 31744
        %656 = vst.msk [vmem:[%s425] sm:$0xff] %vm655, %v653
        %657 = vst.msk [vmem:[%s425 + $0x8] sm:$0xff] %vm655, %v654
        %v658 = vld [vmem:[#allocation2] sm:$0xf]
        %v659 = vld [vmem:[#allocation2 + $0x4] sm:$0xf]
        %v660 = vld [vmem:[#allocation2 + $0x8] sm:$0xf]
        %v661 = vld [vmem:[#allocation2 + $0xc] sm:$0xf]
        %v662 = vld [vmem:[#allocation2 + $0x10] sm:$0xf]
        %v663 = vld [vmem:[#allocation2 + $0x14] sm:$0xf]
        %v664 = vld [vmem:[#allocation2 + $0x18] sm:$0xf]
        %v665 = vld [vmem:[#allocation2 + $0x1c] sm:$0xf]
        %v666 = vld [vmem:[%s2] sm:$0xff]
        %v667 = vld [vmem:[%s2 + $0x8] sm:$0xff]
        %v668 = vld [vmem:[%s2 + $0x10] sm:$0xff]
        %v669 = vld [vmem:[%s2 + $0x18] sm:$0xff]
        %vm670 = vcmask 261120
        %v671 = vsel %vm670, %v427, 0
        %v673 = vsel %vm670, %v428, 0
        %675 = vmatprep.subr.mxu0 0.0
        %676 = vmatpush1.msra.mxu0 0.0
        %677 = vmatprep.subr.mxu0 0.0
        %678 = vmatpush1.msra.mxu0 0.0
        %679 = vmatprep.subr.mxu0 0.0
        %680 = vmatpush1.msra.mxu0 0.0
        %681 = vmatprep.subr.mxu0 0.0
        %682 = vmatpush1.msra.mxu0 0.0
        %683 = vmatprep.subr.mxu0 0.0
        %684 = vmatpush1.msra.mxu0 0.0
        %685 = vmatprep.subr.mxu0 0.0
        %686 = vmatpush1.msra.mxu0 0.0
        %687 = vmatprep.subr.mxu0 0.0
        %688 = vmatpush1.msra.mxu0 0.0
        %689 = vmatprep.subr.mxu0 0.0
        %690 = vmatpush1.msra.mxu0 0.0
        %691 = vmatprep.subr.mxu0 0.0
        %692 = vmatpush1.msra.mxu0 0.0
        %693 = vmatprep.subr.mxu0 0.0
        %694 = vmatpush1.msra.mxu0 0.0
        %695 = vmatprep.subr.mxu0 0.0
        %696 = vmatpush1.msra.mxu0 0.0
        %697 = vmatprep.subr.mxu0 0.0
        %698 = vmatpush1.msra.mxu0 0.0
        %699 = vmatprep.subr.mxu0 0.0
        %700 = vmatpush1.msra.mxu0 %v669
        %701 = vmatprep.subr.mxu0 0.0
        %702 = vmatpush1.msra.mxu0 %v668
        %703 = vmatprep.subr.mxu0 0.0
        %704 = vmatpush1.msra.mxu0 %v667
        %705 = vmatprep.subr.mxu0 0.0
        %706 = vmatpush1.msra.mxu0 %v666
        %707 = vmatprep.subr.mxu0 0.0
        %708 = vmatpush2.msra.mxu0 0.0
        %709 = vmatprep.subr.mxu0 0.0
        %710 = vmatpush2.msra.mxu0 0.0
        %711 = vmatprep.subr.mxu0 0.0
        %712 = vmatpush2.msra.mxu0 0.0
        %713 = vmatprep.subr.mxu0 0.0
        %714 = vmatpush2.msra.mxu0 0.0
        %715 = vmatprep.subr.mxu0 0.0
        %716 = vmatpush2.msra.mxu0 0.0
        %717 = vmatprep.subr.mxu0 0.0
        %718 = vmatpush2.msra.mxu0 0.0
        %719 = vmatprep.subr.mxu0 0.0
        %720 = vmatpush2.msra.mxu0 0.0
        %721 = vmatprep.subr.mxu0 0.0
        %722 = vmatpush2.msra.mxu0 0.0
        %723 = vmatprep.subr.mxu0 0.0
        %724 = vmatpush2.msra.mxu0 0.0
        %725 = vmatprep.subr.mxu0 0.0
        %726 = vmatpush2.msra.mxu0 0.0
        %727 = vmatprep.subr.mxu0 0.0
        %728 = vmatpush2.msra.mxu0 0.0
        %729 = vmatprep.subr.mxu0 0.0
        %730 = vmatpush2.msra.mxu0 0.0
        %731 = vmatprep.subr.mxu0 0.0
        %732 = vmatpush2.msra.mxu0 0.0
        %733 = vmatprep.subr.mxu0 0.0
        %734 = vmatpush2.msra.mxu0 0.0
        %735 = vmatprep.subr.mxu0 0.0
        %736 = vmatpush2.msra.mxu0 0.0
        %737 = vmatprep.subr.mxu0 0.0
        %738 = vmatpush2.msra.mxu0 0.0
        %739 = vmatprep.mubr.f32.mxu0 0.0
        %740 = vmatmul.mubr.f32.gmra.mxu0 %v671
        %v741 = vpop.f32.mrf.mxu0
        %v742 = vadd.f32 0.0, %v741
        %v743 = vpop.f32.mrf.mxu0
        %744 = vmatprep.mubr.f32.mxu0 0.0
        %745 = vmatmul.mubr.f32.gmra.mxu0 %v673
        %v746 = vpop.f32.mrf.mxu0
        %v747 = vadd.f32 0.0, %v746
        %v748 = vpop.f32.mrf.mxu0
        %749 = vdwg.mxu0
        %v750 = vld [vmem:[%s3] sm:$0x1]
        %v752 = vlaneseq
        %v753 = vshrl.u32 %v752, 7
        %v754 = vsub.s32 0, %v753
        %v755 = vrot.slane %v750, %v754
        %v757 = vadd.f32 %v742, %v755
        %v758 = vadd.f32 %v747, %v755
        %v759 = vpack.c.bf16 %v747, %v742
        %v768 = vunpack.c.l.b16 %v658
        %v769 = vunpack.c.l.b16 %v659
        %v770 = vunpack.c.l.b16 %v660
        %v771 = vunpack.c.l.b16 %v661
        %v772 = vunpack.c.l.b16 %v662
        %v773 = vunpack.c.l.b16 %v663
        %v774 = vunpack.c.l.b16 %v664
        %v775 = vunpack.c.l.b16 %v665
        %v776 = vpack.c.b16 %v769, %v768
        %v777 = vpack.c.b16 %v771, %v770
        %v778 = vpack.c.b16 %v773, %v772
        %v779 = vpack.c.b16 %v775, %v774
        %781 = vrot.lane.b32.xlu0 %v759, 96
        %v782 = vpop.permute.xlu0 %781
        %v785 = vsel %vm500, %v776, 0
        %v788 = vsel %vm500, %v777, 0
        %v791 = vsel %vm500, %v778, 0
        %v794 = vsel %vm500, %v779, 0
        %796 = vmatprep.subr.bf16.mxu0 0
        %797 = vmatpush1.bf16.msra.mxu0 0
        %798 = vmatprep.subr.bf16.mxu0 0
        %799 = vmatpush1.bf16.msra.mxu0 0
        %800 = vmatprep.subr.bf16.mxu0 0
        %801 = vmatpush1.bf16.msra.mxu0 0
        %802 = vmatprep.subr.bf16.mxu0 0
        %803 = vmatpush1.bf16.msra.mxu0 0
        %804 = vmatprep.subr.bf16.mxu0 0
        %805 = vmatpush1.bf16.msra.mxu0 0
        %806 = vmatprep.subr.bf16.mxu0 0
        %807 = vmatpush1.bf16.msra.mxu0 0
        %808 = vmatprep.subr.bf16.mxu0 0
        %809 = vmatpush1.bf16.msra.mxu0 0
        %810 = vmatprep.subr.bf16.mxu0 0
        %811 = vmatpush1.bf16.msra.mxu0 %v782
        %812 = vmatprep.subr.bf16.mxu0 0
        %813 = vmatpush2.bf16.msra.mxu0 0
        %814 = vmatprep.subr.bf16.mxu0 0
        %815 = vmatpush2.bf16.msra.mxu0 0
        %816 = vmatprep.subr.bf16.mxu0 0
        %817 = vmatpush2.bf16.msra.mxu0 0
        %818 = vmatprep.subr.bf16.mxu0 0
        %819 = vmatpush2.bf16.msra.mxu0 0
        %820 = vmatprep.subr.bf16.mxu0 0
        %821 = vmatpush2.bf16.msra.mxu0 0
        %822 = vmatprep.subr.bf16.mxu0 0
        %823 = vmatpush2.bf16.msra.mxu0 0
        %824 = vmatprep.subr.bf16.mxu0 0
        %825 = vmatpush2.bf16.msra.mxu0 0
        %826 = vmatprep.subr.bf16.mxu0 0
        %827 = vmatpush2.bf16.msra.mxu0 0
        %828 = vmatprep.mubr.bf16.mxu0 0
        %829 = vmatmul.mubr.bf16.gmra.mxu0 %v785
        %v830 = vpop.f32.mrf.mxu0
        %v831 = vadd.f32 0.0, %v830
        %v832 = vpop.f32.mrf.mxu0
        %v833 = vpop.f32.mrf.mxu0
        %v834 = vadd.f32 0.0, %v833
        %v835 = vpop.f32.mrf.mxu0
        %836 = vmatprep.mubr.bf16.mxu0 0
        %837 = vmatmul.mubr.bf16.gmra.mxu0 %v788
        %v838 = vpop.f32.mrf.mxu0
        %v839 = vadd.f32 0.0, %v838
        %v840 = vpop.f32.mrf.mxu0
        %v841 = vpop.f32.mrf.mxu0
        %v842 = vadd.f32 0.0, %v841
        %v843 = vpop.f32.mrf.mxu0
        %844 = vmatprep.mubr.bf16.mxu0 0
        %845 = vmatmul.mubr.bf16.gmra.mxu0 %v791
        %v846 = vpop.f32.mrf.mxu0
        %v847 = vadd.f32 0.0, %v846
        %v848 = vpop.f32.mrf.mxu0
        %v849 = vpop.f32.mrf.mxu0
        %v850 = vadd.f32 0.0, %v849
        %v851 = vpop.f32.mrf.mxu0
        %852 = vmatprep.mubr.bf16.mxu0 0
        %853 = vmatmul.mubr.bf16.gmra.mxu0 %v794
        %v854 = vpop.f32.mrf.mxu0
        %v855 = vadd.f32 0.0, %v854
        %v856 = vpop.f32.mrf.mxu0
        %v857 = vpop.f32.mrf.mxu0
        %v858 = vadd.f32 0.0, %v857
        %v859 = vpop.f32.mrf.mxu0
        %860 = vdwg.mxu0
        %v861 = vld [vmem:[#allocation6] sm:$0x1]
        %v862 = vld [vmem:[%s5] sm:$0x1]
        %v863 = vadd.f32 %v757, %v831
        %v864 = vadd.f32 %v758, %v834
        %vm865 = vcmp.ge.f32.partialorder %v863, 0.0
        %vm866 = vcmp.ge.f32.partialorder %v864, 0.0
        %v867 = vmul.f32 %v863, 0.2
        %v868 = vmul.f32 %v864, 0.2
        %v869 = vsel %vm865, %v863, %v867
        %v870 = vsel %vm866, %v864, %v868
        %v872 = vlaneseq
        %v873 = vshrl.u32 %v872, 7
        %v874 = vsub.s32 0, %v873
        %v875 = vrot.slane %v861, %v874
        %v877 = vmul.f32 %v869, %v875
        %v878 = vmul.f32 %v870, %v875
        %v880 = vlaneseq
        %v881 = vshrl.u32 %v880, 7
        %v882 = vsub.s32 0, %v881
        %v883 = vrot.slane %v862, %v882
        %v885 = vadd.f32 %v877, %v883
        %v886 = vadd.f32 %v878, %v883
        %v887 = vadd.f32 %v757, %v839
        %v888 = vadd.f32 %v758, %v842
        %vm889 = vcmp.ge.f32.partialorder %v887, 0.0
        %vm890 = vcmp.ge.f32.partialorder %v888, 0.0
        %v891 = vmul.f32 %v887, 0.2
        %v892 = vmul.f32 %v888, 0.2
        %v893 = vsel %vm889, %v887, %v891
        %v894 = vsel %vm890, %v888, %v892
        %v895 = vmul.f32 %v893, %v875
        %v896 = vmul.f32 %v894, %v875
        %v897 = vadd.f32 %v895, %v883
        %v898 = vadd.f32 %v896, %v883
        %v899 = vmax.f32 %v885, %v897
        %v900 = vmax.f32 %v886, %v898
        %v901 = vadd.f32 %v757, %v847
        %v902 = vadd.f32 %v758, %v850
        %vm903 = vcmp.ge.f32.partialorder %v901, 0.0
        %vm904 = vcmp.ge.f32.partialorder %v902, 0.0
        %v905 = vmul.f32 %v901, 0.2
        %v906 = vmul.f32 %v902, 0.2
        %v907 = vsel %vm903, %v901, %v905
        %v908 = vsel %vm904, %v902, %v906
        %v909 = vmul.f32 %v907, %v875
        %v910 = vmul.f32 %v908, %v875
        %v911 = vadd.f32 %v909, %v883
        %v912 = vadd.f32 %v910, %v883
        %v913 = vmax.f32 %v899, %v911
        %v914 = vmax.f32 %v900, %v912
        %v915 = vadd.f32 %v757, %v855
        %v916 = vadd.f32 %v758, %v858
        %vm917 = vcmp.ge.f32.partialorder %v915, 0.0
        %vm918 = vcmp.ge.f32.partialorder %v916, 0.0
        %v919 = vmul.f32 %v915, 0.2
        %v920 = vmul.f32 %v916, 0.2
        %v921 = vsel %vm917, %v915, %v919
        %v922 = vsel %vm918, %v916, %v920
        %v923 = vmul.f32 %v921, %v875
        %v924 = vmul.f32 %v922, %v875
        %v925 = vadd.f32 %v923, %v883
        %v926 = vadd.f32 %v924, %v883
        %v927 = vmax.f32 %v913, %v925
        %v928 = vmax.f32 %v914, %v926
        %s929 = scalar_lea.vmem %s2, 32
        %v930 = vld [vmem:[%s929] sm:$0xff]
        %v931 = vld [vmem:[%s929 + $0x8] sm:$0xff]
        %v932 = vld [vmem:[%s929 + $0x10] sm:$0xff]
        %v933 = vld [vmem:[%s929 + $0x18] sm:$0xff]
        %v935 = vsel %vm670, %v927, 0
        %v938 = vsel %vm670, %v928, 0
        %940 = vmatprep.subr.mxu0 0.0
        %941 = vmatpush1.msra.mxu0 0.0
        %942 = vmatprep.subr.mxu0 0.0
        %943 = vmatpush1.msra.mxu0 0.0
        %944 = vmatprep.subr.mxu0 0.0
        %945 = vmatpush1.msra.mxu0 0.0
        %946 = vmatprep.subr.mxu0 0.0
        %947 = vmatpush1.msra.mxu0 0.0
        %948 = vmatprep.subr.mxu0 0.0
        %949 = vmatpush1.msra.mxu0 0.0
        %950 = vmatprep.subr.mxu0 0.0
        %951 = vmatpush1.msra.mxu0 0.0
        %952 = vmatprep.subr.mxu0 0.0
        %953 = vmatpush1.msra.mxu0 0.0
        %954 = vmatprep.subr.mxu0 0.0
        %955 = vmatpush1.msra.mxu0 0.0
        %956 = vmatprep.subr.mxu0 0.0
        %957 = vmatpush1.msra.mxu0 0.0
        %958 = vmatprep.subr.mxu0 0.0
        %959 = vmatpush1.msra.mxu0 0.0
        %960 = vmatprep.subr.mxu0 0.0
        %961 = vmatpush1.msra.mxu0 0.0
        %962 = vmatprep.subr.mxu0 0.0
        %963 = vmatpush1.msra.mxu0 0.0
        %964 = vmatprep.subr.mxu0 0.0
        %965 = vmatpush1.msra.mxu0 %v933
        %966 = vmatprep.subr.mxu0 0.0
        %967 = vmatpush1.msra.mxu0 %v932
        %968 = vmatprep.subr.mxu0 0.0
        %969 = vmatpush1.msra.mxu0 %v931
        %970 = vmatprep.subr.mxu0 0.0
        %971 = vmatpush1.msra.mxu0 %v930
        %972 = vmatprep.subr.mxu0 0.0
        %973 = vmatpush2.msra.mxu0 0.0
        %974 = vmatprep.subr.mxu0 0.0
        %975 = vmatpush2.msra.mxu0 0.0
        %976 = vmatprep.subr.mxu0 0.0
        %977 = vmatpush2.msra.mxu0 0.0
        %978 = vmatprep.subr.mxu0 0.0
        %979 = vmatpush2.msra.mxu0 0.0
        %980 = vmatprep.subr.mxu0 0.0
        %981 = vmatpush2.msra.mxu0 0.0
        %982 = vmatprep.subr.mxu0 0.0
        %983 = vmatpush2.msra.mxu0 0.0
        %984 = vmatprep.subr.mxu0 0.0
        %985 = vmatpush2.msra.mxu0 0.0
        %986 = vmatprep.subr.mxu0 0.0
        %987 = vmatpush2.msra.mxu0 0.0
        %988 = vmatprep.subr.mxu0 0.0
        %989 = vmatpush2.msra.mxu0 0.0
        %990 = vmatprep.subr.mxu0 0.0
        %991 = vmatpush2.msra.mxu0 0.0
        %992 = vmatprep.subr.mxu0 0.0
        %993 = vmatpush2.msra.mxu0 0.0
        %994 = vmatprep.subr.mxu0 0.0
        %995 = vmatpush2.msra.mxu0 0.0
        %996 = vmatprep.subr.mxu0 0.0
        %997 = vmatpush2.msra.mxu0 0.0
        %998 = vmatprep.subr.mxu0 0.0
        %999 = vmatpush2.msra.mxu0 0.0
        %1000 = vmatprep.subr.mxu0 0.0
        %1001 = vmatpush2.msra.mxu0 0.0
        %1002 = vmatprep.subr.mxu0 0.0
        %1003 = vmatpush2.msra.mxu0 0.0
        %1004 = vmatprep.mubr.f32.mxu0 0.0
        %1005 = vmatmul.mubr.f32.gmra.mxu0 %v935
        %v1006 = vpop.f32.mrf.mxu0
        %v1007 = vadd.f32 0.0, %v1006
        %v1008 = vpop.f32.mrf.mxu0
        %1009 = vmatprep.mubr.f32.mxu0 0.0
        %1010 = vmatmul.mubr.f32.gmra.mxu0 %v938
        %v1011 = vpop.f32.mrf.mxu0
        %v1012 = vadd.f32 0.0, %v1011
        %v1013 = vpop.f32.mrf.mxu0
        %1014 = vdwg.mxu0
        %s1015 = scalar_lea.vmem %s3, 1
        %v1016 = vld [vmem:[%s1015] sm:$0x1]
        %v1018 = vlaneseq
        %v1019 = vshrl.u32 %v1018, 7
        %v1020 = vsub.s32 0, %v1019
        %v1021 = vrot.slane %v1016, %v1020
        %v1023 = vadd.f32 %v1007, %v1021
        %v1024 = vadd.f32 %v1012, %v1021
        %v1025 = vpack.c.bf16 %v1012, %v1007
        %1027 = vrot.lane.b32.xlu0 %v1025, 96
        %v1028 = vpop.permute.xlu0 %1027
        %1030 = vmatprep.subr.bf16.mxu0 0
        %1031 = vmatpush1.bf16.msra.mxu0 0
        %1032 = vmatprep.subr.bf16.mxu0 0
        %1033 = vmatpush1.bf16.msra.mxu0 0
        %1034 = vmatprep.subr.bf16.mxu0 0
        %1035 = vmatpush1.bf16.msra.mxu0 0
        %1036 = vmatprep.subr.bf16.mxu0 0
        %1037 = vmatpush1.bf16.msra.mxu0 0
        %1038 = vmatprep.subr.bf16.mxu0 0
        %1039 = vmatpush1.bf16.msra.mxu0 0
        %1040 = vmatprep.subr.bf16.mxu0 0
        %1041 = vmatpush1.bf16.msra.mxu0 0
        %1042 = vmatprep.subr.bf16.mxu0 0
        %1043 = vmatpush1.bf16.msra.mxu0 0
        %1044 = vmatprep.subr.bf16.mxu0 0
        %1045 = vmatpush1.bf16.msra.mxu0 %v1028
        %1046 = vmatprep.subr.bf16.mxu0 0
        %1047 = vmatpush2.bf16.msra.mxu0 0
        %1048 = vmatprep.subr.bf16.mxu0 0
        %1049 = vmatpush2.bf16.msra.mxu0 0
        %1050 = vmatprep.subr.bf16.mxu0 0
        %1051 = vmatpush2.bf16.msra.mxu0 0
        %1052 = vmatprep.subr.bf16.mxu0 0
        %1053 = vmatpush2.bf16.msra.mxu0 0
        %1054 = vmatprep.subr.bf16.mxu0 0
        %1055 = vmatpush2.bf16.msra.mxu0 0
        %1056 = vmatprep.subr.bf16.mxu0 0
        %1057 = vmatpush2.bf16.msra.mxu0 0
        %1058 = vmatprep.subr.bf16.mxu0 0
        %1059 = vmatpush2.bf16.msra.mxu0 0
        %1060 = vmatprep.subr.bf16.mxu0 0
        %1061 = vmatpush2.bf16.msra.mxu0 0
        %1062 = vmatprep.mubr.bf16.mxu0 0
        %1063 = vmatmul.mubr.bf16.gmra.mxu0 %v785
        %v1064 = vpop.f32.mrf.mxu0
        %v1065 = vadd.f32 0.0, %v1064
        %v1066 = vpop.f32.mrf.mxu0
        %v1067 = vpop.f32.mrf.mxu0
        %v1068 = vadd.f32 0.0, %v1067
        %v1069 = vpop.f32.mrf.mxu0
        %1070 = vmatprep.mubr.bf16.mxu0 0
        %1071 = vmatmul.mubr.bf16.gmra.mxu0 %v788
        %v1072 = vpop.f32.mrf.mxu0
        %v1073 = vadd.f32 0.0, %v1072
        %v1074 = vpop.f32.mrf.mxu0
        %v1075 = vpop.f32.mrf.mxu0
        %v1076 = vadd.f32 0.0, %v1075
        %v1077 = vpop.f32.mrf.mxu0
        %1078 = vmatprep.mubr.bf16.mxu0 0
        %1079 = vmatmul.mubr.bf16.gmra.mxu0 %v791
        %v1080 = vpop.f32.mrf.mxu0
        %v1081 = vadd.f32 0.0, %v1080
        %v1082 = vpop.f32.mrf.mxu0
        %v1083 = vpop.f32.mrf.mxu0
        %v1084 = vadd.f32 0.0, %v1083
        %v1085 = vpop.f32.mrf.mxu0
        %1086 = vmatprep.mubr.bf16.mxu0 0
        %1087 = vmatmul.mubr.bf16.gmra.mxu0 %v794
        %v1088 = vpop.f32.mrf.mxu0
        %v1089 = vadd.f32 0.0, %v1088
        %v1090 = vpop.f32.mrf.mxu0
        %v1091 = vpop.f32.mrf.mxu0
        %v1092 = vadd.f32 0.0, %v1091
        %v1093 = vpop.f32.mrf.mxu0
        %1094 = vdwg.mxu0
        %s1095 = scalar_lea.vmem [#allocation6], 1
        %v1096 = vld [vmem:[%s1095] sm:$0x1]
        %s1097 = scalar_lea.vmem %s5, 1
        %v1098 = vld [vmem:[%s1097] sm:$0x1]
        %v1099 = vadd.f32 %v1023, %v1065
        %v1100 = vadd.f32 %v1024, %v1068
        %vm1101 = vcmp.ge.f32.partialorder %v1099, 0.0
        %vm1102 = vcmp.ge.f32.partialorder %v1100, 0.0
        %v1103 = vmul.f32 %v1099, 0.2
        %v1104 = vmul.f32 %v1100, 0.2
        %v1105 = vsel %vm1101, %v1099, %v1103
        %v1106 = vsel %vm1102, %v1100, %v1104
        %v1108 = vlaneseq
        %v1109 = vshrl.u32 %v1108, 7
        %v1110 = vsub.s32 0, %v1109
        %v1111 = vrot.slane %v1096, %v1110
        %v1113 = vmul.f32 %v1105, %v1111
        %v1114 = vmul.f32 %v1106, %v1111
        %v1116 = vlaneseq
        %v1117 = vshrl.u32 %v1116, 7
        %v1118 = vsub.s32 0, %v1117
        %v1119 = vrot.slane %v1098, %v1118
        %v1121 = vadd.f32 %v1113, %v1119
        %v1122 = vadd.f32 %v1114, %v1119
        %v1123 = vadd.f32 %v1023, %v1073
        %v1124 = vadd.f32 %v1024, %v1076
        %vm1125 = vcmp.ge.f32.partialorder %v1123, 0.0
        %vm1126 = vcmp.ge.f32.partialorder %v1124, 0.0
        %v1127 = vmul.f32 %v1123, 0.2
        %v1128 = vmul.f32 %v1124, 0.2
        %v1129 = vsel %vm1125, %v1123, %v1127
        %v1130 = vsel %vm1126, %v1124, %v1128
        %v1131 = vmul.f32 %v1129, %v1111
        %v1132 = vmul.f32 %v1130, %v1111
        %v1133 = vadd.f32 %v1131, %v1119
        %v1134 = vadd.f32 %v1132, %v1119
        %v1135 = vmax.f32 %v1121, %v1133
        %v1136 = vmax.f32 %v1122, %v1134
        %v1137 = vadd.f32 %v1023, %v1081
        %v1138 = vadd.f32 %v1024, %v1084
        %vm1139 = vcmp.ge.f32.partialorder %v1137, 0.0
        %vm1140 = vcmp.ge.f32.partialorder %v1138, 0.0
        %v1141 = vmul.f32 %v1137, 0.2
        %v1142 = vmul.f32 %v1138, 0.2
        %v1143 = vsel %vm1139, %v1137, %v1141
        %v1144 = vsel %vm1140, %v1138, %v1142
        %v1145 = vmul.f32 %v1143, %v1111
        %v1146 = vmul.f32 %v1144, %v1111
        %v1147 = vadd.f32 %v1145, %v1119
        %v1148 = vadd.f32 %v1146, %v1119
        %v1149 = vmax.f32 %v1135, %v1147
        %v1150 = vmax.f32 %v1136, %v1148
        %v1151 = vadd.f32 %v1023, %v1089
        %v1152 = vadd.f32 %v1024, %v1092
        %vm1153 = vcmp.ge.f32.partialorder %v1151, 0.0
        %vm1154 = vcmp.ge.f32.partialorder %v1152, 0.0
        %v1155 = vmul.f32 %v1151, 0.2
        %v1156 = vmul.f32 %v1152, 0.2
        %v1157 = vsel %vm1153, %v1151, %v1155
        %v1158 = vsel %vm1154, %v1152, %v1156
        %v1159 = vmul.f32 %v1157, %v1111
        %v1160 = vmul.f32 %v1158, %v1111
        %v1161 = vadd.f32 %v1159, %v1119
        %v1162 = vadd.f32 %v1160, %v1119
        %v1163 = vmax.f32 %v1149, %v1161
        %v1164 = vmax.f32 %v1150, %v1162
        %s1165 = scalar_lea.vmem %s2, 64
        %v1166 = vld [vmem:[%s1165] sm:$0xff]
        %v1167 = vld [vmem:[%s1165 + $0x8] sm:$0xff]
        %v1168 = vld [vmem:[%s1165 + $0x10] sm:$0xff]
        %v1169 = vld [vmem:[%s1165 + $0x18] sm:$0xff]
        %v1171 = vsel %vm670, %v1163, 0
        %v1174 = vsel %vm670, %v1164, 0
        %1176 = vmatprep.subr.mxu0 0.0
        %1177 = vmatpush1.msra.mxu0 0.0
        %1178 = vmatprep.subr.mxu0 0.0
        %1179 = vmatpush1.msra.mxu0 0.0
        %1180 = vmatprep.subr.mxu0 0.0
        %1181 = vmatpush1.msra.mxu0 0.0
        %1182 = vmatprep.subr.mxu0 0.0
        %1183 = vmatpush1.msra.mxu0 0.0
        %1184 = vmatprep.subr.mxu0 0.0
        %1185 = vmatpush1.msra.mxu0 0.0
        %1186 = vmatprep.subr.mxu0 0.0
        %1187 = vmatpush1.msra.mxu0 0.0
        %1188 = vmatprep.subr.mxu0 0.0
        %1189 = vmatpush1.msra.mxu0 0.0
        %1190 = vmatprep.subr.mxu0 0.0
        %1191 = vmatpush1.msra.mxu0 0.0
        %1192 = vmatprep.subr.mxu0 0.0
        %1193 = vmatpush1.msra.mxu0 0.0
        %1194 = vmatprep.subr.mxu0 0.0
        %1195 = vmatpush1.msra.mxu0 0.0
        %1196 = vmatprep.subr.mxu0 0.0
        %1197 = vmatpush1.msra.mxu0 0.0
        %1198 = vmatprep.subr.mxu0 0.0
        %1199 = vmatpush1.msra.mxu0 0.0
        %1200 = vmatprep.subr.mxu0 0.0
        %1201 = vmatpush1.msra.mxu0 %v1169
        %1202 = vmatprep.subr.mxu0 0.0
        %1203 = vmatpush1.msra.mxu0 %v1168
        %1204 = vmatprep.subr.mxu0 0.0
        %1205 = vmatpush1.msra.mxu0 %v1167
        %1206 = vmatprep.subr.mxu0 0.0
        %1207 = vmatpush1.msra.mxu0 %v1166
        %1208 = vmatprep.subr.mxu0 0.0
        %1209 = vmatpush2.msra.mxu0 0.0
        %1210 = vmatprep.subr.mxu0 0.0
        %1211 = vmatpush2.msra.mxu0 0.0
        %1212 = vmatprep.subr.mxu0 0.0
        %1213 = vmatpush2.msra.mxu0 0.0
        %1214 = vmatprep.subr.mxu0 0.0
        %1215 = vmatpush2.msra.mxu0 0.0
        %1216 = vmatprep.subr.mxu0 0.0
        %1217 = vmatpush2.msra.mxu0 0.0
        %1218 = vmatprep.subr.mxu0 0.0
        %1219 = vmatpush2.msra.mxu0 0.0
        %1220 = vmatprep.subr.mxu0 0.0
        %1221 = vmatpush2.msra.mxu0 0.0
        %1222 = vmatprep.subr.mxu0 0.0
        %1223 = vmatpush2.msra.mxu0 0.0
        %1224 = vmatprep.subr.mxu0 0.0
        %1225 = vmatpush2.msra.mxu0 0.0
        %1226 = vmatprep.subr.mxu0 0.0
        %1227 = vmatpush2.msra.mxu0 0.0
        %1228 = vmatprep.subr.mxu0 0.0
        %1229 = vmatpush2.msra.mxu0 0.0
        %1230 = vmatprep.subr.mxu0 0.0
        %1231 = vmatpush2.msra.mxu0 0.0
        %1232 = vmatprep.subr.mxu0 0.0
        %1233 = vmatpush2.msra.mxu0 0.0
        %1234 = vmatprep.subr.mxu0 0.0
        %1235 = vmatpush2.msra.mxu0 0.0
        %1236 = vmatprep.subr.mxu0 0.0
        %1237 = vmatpush2.msra.mxu0 0.0
        %1238 = vmatprep.subr.mxu0 0.0
        %1239 = vmatpush2.msra.mxu0 0.0
        %1240 = vmatprep.mubr.f32.mxu0 0.0
        %1241 = vmatmul.mubr.f32.gmra.mxu0 %v1171
        %v1242 = vpop.f32.mrf.mxu0
        %v1243 = vadd.f32 0.0, %v1242
        %v1244 = vpop.f32.mrf.mxu0
        %1245 = vmatprep.mubr.f32.mxu0 0.0
        %1246 = vmatmul.mubr.f32.gmra.mxu0 %v1174
        %v1247 = vpop.f32.mrf.mxu0
        %v1248 = vadd.f32 0.0, %v1247
        %v1249 = vpop.f32.mrf.mxu0
        %1250 = vdwg.mxu0
        %s1251 = scalar_lea.vmem %s3, 2
        %v1252 = vld [vmem:[%s1251] sm:$0x1]
        %v1254 = vlaneseq
        %v1255 = vshrl.u32 %v1254, 7
        %v1256 = vsub.s32 0, %v1255
        %v1257 = vrot.slane %v1252, %v1256
        %v1259 = vadd.f32 %v1243, %v1257
        %v1260 = vadd.f32 %v1248, %v1257
        %v1261 = vpack.c.bf16 %v1248, %v1243
        %1263 = vrot.lane.b32.xlu0 %v1261, 96
        %v1264 = vpop.permute.xlu0 %1263
        %1266 = vmatprep.subr.bf16.mxu0 0
        %1267 = vmatpush1.bf16.msra.mxu0 0
        %1268 = vmatprep.subr.bf16.mxu0 0
        %1269 = vmatpush1.bf16.msra.mxu0 0
        %1270 = vmatprep.subr.bf16.mxu0 0
        %1271 = vmatpush1.bf16.msra.mxu0 0
        %1272 = vmatprep.subr.bf16.mxu0 0
        %1273 = vmatpush1.bf16.msra.mxu0 0
        %1274 = vmatprep.subr.bf16.mxu0 0
        %1275 = vmatpush1.bf16.msra.mxu0 0
        %1276 = vmatprep.subr.bf16.mxu0 0
        %1277 = vmatpush1.bf16.msra.mxu0 0
        %1278 = vmatprep.subr.bf16.mxu0 0
        %1279 = vmatpush1.bf16.msra.mxu0 0
        %1280 = vmatprep.subr.bf16.mxu0 0
        %1281 = vmatpush1.bf16.msra.mxu0 %v1264
        %1282 = vmatprep.subr.bf16.mxu0 0
        %1283 = vmatpush2.bf16.msra.mxu0 0
        %1284 = vmatprep.subr.bf16.mxu0 0
        %1285 = vmatpush2.bf16.msra.mxu0 0
        %1286 = vmatprep.subr.bf16.mxu0 0
        %1287 = vmatpush2.bf16.msra.mxu0 0
        %1288 = vmatprep.subr.bf16.mxu0 0
        %1289 = vmatpush2.bf16.msra.mxu0 0
        %1290 = vmatprep.subr.bf16.mxu0 0
        %1291 = vmatpush2.bf16.msra.mxu0 0
        %1292 = vmatprep.subr.bf16.mxu0 0
        %1293 = vmatpush2.bf16.msra.mxu0 0
        %1294 = vmatprep.subr.bf16.mxu0 0
        %1295 = vmatpush2.bf16.msra.mxu0 0
        %1296 = vmatprep.subr.bf16.mxu0 0
        %1297 = vmatpush2.bf16.msra.mxu0 0
        %1298 = vmatprep.mubr.bf16.mxu0 0
        %1299 = vmatmul.mubr.bf16.gmra.mxu0 %v785
        %v1300 = vpop.f32.mrf.mxu0
        %v1301 = vadd.f32 0.0, %v1300
        %v1302 = vpop.f32.mrf.mxu0
        %v1303 = vpop.f32.mrf.mxu0
        %v1304 = vadd.f32 0.0, %v1303
        %v1305 = vpop.f32.mrf.mxu0
        %1306 = vmatprep.mubr.bf16.mxu0 0
        %1307 = vmatmul.mubr.bf16.gmra.mxu0 %v788
        %v1308 = vpop.f32.mrf.mxu0
        %v1309 = vadd.f32 0.0, %v1308
        %v1310 = vpop.f32.mrf.mxu0
        %v1311 = vpop.f32.mrf.mxu0
        %v1312 = vadd.f32 0.0, %v1311
        %v1313 = vpop.f32.mrf.mxu0
        %1314 = vmatprep.mubr.bf16.mxu0 0
        %1315 = vmatmul.mubr.bf16.gmra.mxu0 %v791
        %v1316 = vpop.f32.mrf.mxu0
        %v1317 = vadd.f32 0.0, %v1316
        %v1318 = vpop.f32.mrf.mxu0
        %v1319 = vpop.f32.mrf.mxu0
        %v1320 = vadd.f32 0.0, %v1319
        %v1321 = vpop.f32.mrf.mxu0
        %1322 = vmatprep.mubr.bf16.mxu0 0
        %1323 = vmatmul.mubr.bf16.gmra.mxu0 %v794
        %v1324 = vpop.f32.mrf.mxu0
        %v1325 = vadd.f32 0.0, %v1324
        %v1326 = vpop.f32.mrf.mxu0
        %v1327 = vpop.f32.mrf.mxu0
        %v1328 = vadd.f32 0.0, %v1327
        %v1329 = vpop.f32.mrf.mxu0
        %1330 = vdwg.mxu0
        %s1331 = scalar_lea.vmem [#allocation6], 2
        %v1332 = vld [vmem:[%s1331] sm:$0x1]
        %s1333 = scalar_lea.vmem %s5, 2
        %v1334 = vld [vmem:[%s1333] sm:$0x1]
        %v1335 = vadd.f32 %v1259, %v1301
        %v1336 = vadd.f32 %v1260, %v1304
        %vm1337 = vcmp.ge.f32.partialorder %v1335, 0.0
        %vm1338 = vcmp.ge.f32.partialorder %v1336, 0.0
        %v1339 = vmul.f32 %v1335, 0.2
        %v1340 = vmul.f32 %v1336, 0.2
        %v1341 = vsel %vm1337, %v1335, %v1339
        %v1342 = vsel %vm1338, %v1336, %v1340
        %v1344 = vlaneseq
        %v1345 = vshrl.u32 %v1344, 7
        %v1346 = vsub.s32 0, %v1345
        %v1347 = vrot.slane %v1332, %v1346
        %v1349 = vmul.f32 %v1341, %v1347
        %v1350 = vmul.f32 %v1342, %v1347
        %v1352 = vlaneseq
        %v1353 = vshrl.u32 %v1352, 7
        %v1354 = vsub.s32 0, %v1353
        %v1355 = vrot.slane %v1334, %v1354
        %v1357 = vadd.f32 %v1349, %v1355
        %v1358 = vadd.f32 %v1350, %v1355
        %v1359 = vadd.f32 %v1259, %v1309
        %v1360 = vadd.f32 %v1260, %v1312
        %vm1361 = vcmp.ge.f32.partialorder %v1359, 0.0
        %vm1362 = vcmp.ge.f32.partialorder %v1360, 0.0
        %v1363 = vmul.f32 %v1359, 0.2
        %v1364 = vmul.f32 %v1360, 0.2
        %v1365 = vsel %vm1361, %v1359, %v1363
        %v1366 = vsel %vm1362, %v1360, %v1364
        %v1367 = vmul.f32 %v1365, %v1347
        %v1368 = vmul.f32 %v1366, %v1347
        %v1369 = vadd.f32 %v1367, %v1355
        %v1370 = vadd.f32 %v1368, %v1355
        %v1371 = vmax.f32 %v1357, %v1369
        %v1372 = vmax.f32 %v1358, %v1370
        %v1373 = vadd.f32 %v1259, %v1317
        %v1374 = vadd.f32 %v1260, %v1320
        %vm1375 = vcmp.ge.f32.partialorder %v1373, 0.0
        %vm1376 = vcmp.ge.f32.partialorder %v1374, 0.0
        %v1377 = vmul.f32 %v1373, 0.2
        %v1378 = vmul.f32 %v1374, 0.2
        %v1379 = vsel %vm1375, %v1373, %v1377
        %v1380 = vsel %vm1376, %v1374, %v1378
        %v1381 = vmul.f32 %v1379, %v1347
        %v1382 = vmul.f32 %v1380, %v1347
        %v1383 = vadd.f32 %v1381, %v1355
        %v1384 = vadd.f32 %v1382, %v1355
        %v1385 = vmax.f32 %v1371, %v1383
        %v1386 = vmax.f32 %v1372, %v1384
        %v1387 = vadd.f32 %v1259, %v1325
        %v1388 = vadd.f32 %v1260, %v1328
        %vm1389 = vcmp.ge.f32.partialorder %v1387, 0.0
        %vm1390 = vcmp.ge.f32.partialorder %v1388, 0.0
        %v1391 = vmul.f32 %v1387, 0.2
        %v1392 = vmul.f32 %v1388, 0.2
        %v1393 = vsel %vm1389, %v1387, %v1391
        %v1394 = vsel %vm1390, %v1388, %v1392
        %v1395 = vmul.f32 %v1393, %v1347
        %v1396 = vmul.f32 %v1394, %v1347
        %v1397 = vadd.f32 %v1395, %v1355
        %v1398 = vadd.f32 %v1396, %v1355
        %v1399 = vmax.f32 %v1385, %v1397
        %v1400 = vmax.f32 %v1386, %v1398
        %s1401 = scalar_lea.vmem %s2, 96
        %v1402 = vld [vmem:[%s1401] sm:$0xff]
        %v1403 = vld [vmem:[%s1401 + $0x8] sm:$0xff]
        %v1404 = vld [vmem:[%s1401 + $0x10] sm:$0xff]
        %v1405 = vld [vmem:[%s1401 + $0x18] sm:$0xff]
        %v1407 = vsel %vm670, %v1399, 0
        %v1410 = vsel %vm670, %v1400, 0
        %1412 = vmatprep.subr.mxu0 0.0
        %1413 = vmatpush1.msra.mxu0 0.0
        %1414 = vmatprep.subr.mxu0 0.0
        %1415 = vmatpush1.msra.mxu0 0.0
        %1416 = vmatprep.subr.mxu0 0.0
        %1417 = vmatpush1.msra.mxu0 0.0
        %1418 = vmatprep.subr.mxu0 0.0
        %1419 = vmatpush1.msra.mxu0 0.0
        %1420 = vmatprep.subr.mxu0 0.0
        %1421 = vmatpush1.msra.mxu0 0.0
        %1422 = vmatprep.subr.mxu0 0.0
        %1423 = vmatpush1.msra.mxu0 0.0
        %1424 = vmatprep.subr.mxu0 0.0
        %1425 = vmatpush1.msra.mxu0 0.0
        %1426 = vmatprep.subr.mxu0 0.0
        %1427 = vmatpush1.msra.mxu0 0.0
        %1428 = vmatprep.subr.mxu0 0.0
        %1429 = vmatpush1.msra.mxu0 0.0
        %1430 = vmatprep.subr.mxu0 0.0
        %1431 = vmatpush1.msra.mxu0 0.0
        %1432 = vmatprep.subr.mxu0 0.0
        %1433 = vmatpush1.msra.mxu0 0.0
        %1434 = vmatprep.subr.mxu0 0.0
        %1435 = vmatpush1.msra.mxu0 0.0
        %1436 = vmatprep.subr.mxu0 0.0
        %1437 = vmatpush1.msra.mxu0 %v1405
        %1438 = vmatprep.subr.mxu0 0.0
        %1439 = vmatpush1.msra.mxu0 %v1404
        %1440 = vmatprep.subr.mxu0 0.0
        %1441 = vmatpush1.msra.mxu0 %v1403
        %1442 = vmatprep.subr.mxu0 0.0
        %1443 = vmatpush1.msra.mxu0 %v1402
        %1444 = vmatprep.subr.mxu0 0.0
        %1445 = vmatpush2.msra.mxu0 0.0
        %1446 = vmatprep.subr.mxu0 0.0
        %1447 = vmatpush2.msra.mxu0 0.0
        %1448 = vmatprep.subr.mxu0 0.0
        %1449 = vmatpush2.msra.mxu0 0.0
        %1450 = vmatprep.subr.mxu0 0.0
        %1451 = vmatpush2.msra.mxu0 0.0
        %1452 = vmatprep.subr.mxu0 0.0
        %1453 = vmatpush2.msra.mxu0 0.0
        %1454 = vmatprep.subr.mxu0 0.0
        %1455 = vmatpush2.msra.mxu0 0.0
        %1456 = vmatprep.subr.mxu0 0.0
        %1457 = vmatpush2.msra.mxu0 0.0
        %1458 = vmatprep.subr.mxu0 0.0
        %1459 = vmatpush2.msra.mxu0 0.0
        %1460 = vmatprep.subr.mxu0 0.0
        %1461 = vmatpush2.msra.mxu0 0.0
        %1462 = vmatprep.subr.mxu0 0.0
        %1463 = vmatpush2.msra.mxu0 0.0
        %1464 = vmatprep.subr.mxu0 0.0
        %1465 = vmatpush2.msra.mxu0 0.0
        %1466 = vmatprep.subr.mxu0 0.0
        %1467 = vmatpush2.msra.mxu0 0.0
        %1468 = vmatprep.subr.mxu0 0.0
        %1469 = vmatpush2.msra.mxu0 0.0
        %1470 = vmatprep.subr.mxu0 0.0
        %1471 = vmatpush2.msra.mxu0 0.0
        %1472 = vmatprep.subr.mxu0 0.0
        %1473 = vmatpush2.msra.mxu0 0.0
        %1474 = vmatprep.subr.mxu0 0.0
        %1475 = vmatpush2.msra.mxu0 0.0
        %1476 = vmatprep.mubr.f32.mxu0 0.0
        %1477 = vmatmul.mubr.f32.gmra.mxu0 %v1407
        %v1478 = vpop.f32.mrf.mxu0
        %v1479 = vadd.f32 0.0, %v1478
        %v1480 = vpop.f32.mrf.mxu0
        %1481 = vmatprep.mubr.f32.mxu0 0.0
        %1482 = vmatmul.mubr.f32.gmra.mxu0 %v1410
        %v1483 = vpop.f32.mrf.mxu0
        %v1484 = vadd.f32 0.0, %v1483
        %v1485 = vpop.f32.mrf.mxu0
        %1486 = vdwg.mxu0
        %s1487 = scalar_lea.vmem %s3, 3
        %v1488 = vld [vmem:[%s1487] sm:$0x1]
        %v1490 = vlaneseq
        %v1491 = vshrl.u32 %v1490, 7
        %v1492 = vsub.s32 0, %v1491
        %v1493 = vrot.slane %v1488, %v1492
        %v1495 = vadd.f32 %v1479, %v1493
        %v1496 = vadd.f32 %v1484, %v1493
        %v1497 = vpack.c.bf16 %v1484, %v1479
        %1499 = vrot.lane.b32.xlu0 %v1497, 96
        %v1500 = vpop.permute.xlu0 %1499
        %1502 = vmatprep.subr.bf16.mxu0 0
        %1503 = vmatpush1.bf16.msra.mxu0 0
        %1504 = vmatprep.subr.bf16.mxu0 0
        %1505 = vmatpush1.bf16.msra.mxu0 0
        %1506 = vmatprep.subr.bf16.mxu0 0
        %1507 = vmatpush1.bf16.msra.mxu0 0
        %1508 = vmatprep.subr.bf16.mxu0 0
        %1509 = vmatpush1.bf16.msra.mxu0 0
        %1510 = vmatprep.subr.bf16.mxu0 0
        %1511 = vmatpush1.bf16.msra.mxu0 0
        %1512 = vmatprep.subr.bf16.mxu0 0
        %1513 = vmatpush1.bf16.msra.mxu0 0
        %1514 = vmatprep.subr.bf16.mxu0 0
        %1515 = vmatpush1.bf16.msra.mxu0 0
        %1516 = vmatprep.subr.bf16.mxu0 0
        %1517 = vmatpush1.bf16.msra.mxu0 %v1500
        %1518 = vmatprep.subr.bf16.mxu0 0
        %1519 = vmatpush2.bf16.msra.mxu0 0
        %1520 = vmatprep.subr.bf16.mxu0 0
        %1521 = vmatpush2.bf16.msra.mxu0 0
        %1522 = vmatprep.subr.bf16.mxu0 0
        %1523 = vmatpush2.bf16.msra.mxu0 0
        %1524 = vmatprep.subr.bf16.mxu0 0
        %1525 = vmatpush2.bf16.msra.mxu0 0
        %1526 = vmatprep.subr.bf16.mxu0 0
        %1527 = vmatpush2.bf16.msra.mxu0 0
        %1528 = vmatprep.subr.bf16.mxu0 0
        %1529 = vmatpush2.bf16.msra.mxu0 0
        %1530 = vmatprep.subr.bf16.mxu0 0
        %1531 = vmatpush2.bf16.msra.mxu0 0
        %1532 = vmatprep.subr.bf16.mxu0 0
        %1533 = vmatpush2.bf16.msra.mxu0 0
        %1534 = vmatprep.mubr.bf16.mxu0 0
        %1535 = vmatmul.mubr.bf16.gmra.mxu0 %v785
        %v1536 = vpop.f32.mrf.mxu0
        %v1537 = vadd.f32 0.0, %v1536
        %v1538 = vpop.f32.mrf.mxu0
        %v1539 = vpop.f32.mrf.mxu0
        %v1540 = vadd.f32 0.0, %v1539
        %v1541 = vpop.f32.mrf.mxu0
        %1542 = vmatprep.mubr.bf16.mxu0 0
        %1543 = vmatmul.mubr.bf16.gmra.mxu0 %v788
        %v1544 = vpop.f32.mrf.mxu0
        %v1545 = vadd.f32 0.0, %v1544
        %v1546 = vpop.f32.mrf.mxu0
        %v1547 = vpop.f32.mrf.mxu0
        %v1548 = vadd.f32 0.0, %v1547
        %v1549 = vpop.f32.mrf.mxu0
        %1550 = vmatprep.mubr.bf16.mxu0 0
        %1551 = vmatmul.mubr.bf16.gmra.mxu0 %v791
        %v1552 = vpop.f32.mrf.mxu0
        %v1553 = vadd.f32 0.0, %v1552
        %v1554 = vpop.f32.mrf.mxu0
        %v1555 = vpop.f32.mrf.mxu0
        %v1556 = vadd.f32 0.0, %v1555
        %v1557 = vpop.f32.mrf.mxu0
        %1558 = vmatprep.mubr.bf16.mxu0 0
        %1559 = vmatmul.mubr.bf16.gmra.mxu0 %v794
        %v1560 = vpop.f32.mrf.mxu0
        %v1561 = vadd.f32 0.0, %v1560
        %v1562 = vpop.f32.mrf.mxu0
        %v1563 = vpop.f32.mrf.mxu0
        %v1564 = vadd.f32 0.0, %v1563
        %v1565 = vpop.f32.mrf.mxu0
        %1566 = vdwg.mxu0
        %s1567 = scalar_lea.vmem [#allocation6], 3
        %v1568 = vld [vmem:[%s1567] sm:$0x1]
        %s1569 = scalar_lea.vmem %s5, 3
        %v1570 = vld [vmem:[%s1569] sm:$0x1]
        %v1571 = vadd.f32 %v1495, %v1537
        %v1572 = vadd.f32 %v1496, %v1540
        %vm1573 = vcmp.ge.f32.partialorder %v1571, 0.0
        %vm1574 = vcmp.ge.f32.partialorder %v1572, 0.0
        %v1575 = vmul.f32 %v1571, 0.2
        %v1576 = vmul.f32 %v1572, 0.2
        %v1577 = vsel %vm1573, %v1571, %v1575
        %v1578 = vsel %vm1574, %v1572, %v1576
        %v1580 = vlaneseq
        %v1581 = vshrl.u32 %v1580, 7
        %v1582 = vsub.s32 0, %v1581
        %v1583 = vrot.slane %v1568, %v1582
        %v1585 = vmul.f32 %v1577, %v1583
        %v1586 = vmul.f32 %v1578, %v1583
        %v1588 = vlaneseq
        %v1589 = vshrl.u32 %v1588, 7
        %v1590 = vsub.s32 0, %v1589
        %v1591 = vrot.slane %v1570, %v1590
        %v1593 = vadd.f32 %v1585, %v1591
        %v1594 = vadd.f32 %v1586, %v1591
        %v1595 = vadd.f32 %v1495, %v1545
        %v1596 = vadd.f32 %v1496, %v1548
        %vm1597 = vcmp.ge.f32.partialorder %v1595, 0.0
        %vm1598 = vcmp.ge.f32.partialorder %v1596, 0.0
        %v1599 = vmul.f32 %v1595, 0.2
        %v1600 = vmul.f32 %v1596, 0.2
        %v1601 = vsel %vm1597, %v1595, %v1599
        %v1602 = vsel %vm1598, %v1596, %v1600
        %v1603 = vmul.f32 %v1601, %v1583
        %v1604 = vmul.f32 %v1602, %v1583
        %v1605 = vadd.f32 %v1603, %v1591
        %v1606 = vadd.f32 %v1604, %v1591
        %v1607 = vmax.f32 %v1593, %v1605
        %v1608 = vmax.f32 %v1594, %v1606
        %v1609 = vadd.f32 %v1495, %v1553
        %v1610 = vadd.f32 %v1496, %v1556
        %vm1611 = vcmp.ge.f32.partialorder %v1609, 0.0
        %vm1612 = vcmp.ge.f32.partialorder %v1610, 0.0
        %v1613 = vmul.f32 %v1609, 0.2
        %v1614 = vmul.f32 %v1610, 0.2
        %v1615 = vsel %vm1611, %v1609, %v1613
        %v1616 = vsel %vm1612, %v1610, %v1614
        %v1617 = vmul.f32 %v1615, %v1583
        %v1618 = vmul.f32 %v1616, %v1583
        %v1619 = vadd.f32 %v1617, %v1591
        %v1620 = vadd.f32 %v1618, %v1591
        %v1621 = vmax.f32 %v1607, %v1619
        %v1622 = vmax.f32 %v1608, %v1620
        %v1623 = vadd.f32 %v1495, %v1561
        %v1624 = vadd.f32 %v1496, %v1564
        %vm1625 = vcmp.ge.f32.partialorder %v1623, 0.0
        %vm1626 = vcmp.ge.f32.partialorder %v1624, 0.0
        %v1627 = vmul.f32 %v1623, 0.2
        %v1628 = vmul.f32 %v1624, 0.2
        %v1629 = vsel %vm1625, %v1623, %v1627
        %v1630 = vsel %vm1626, %v1624, %v1628
        %v1631 = vmul.f32 %v1629, %v1583
        %v1632 = vmul.f32 %v1630, %v1583
        %v1633 = vadd.f32 %v1631, %v1591
        %v1634 = vadd.f32 %v1632, %v1591
        %v1635 = vmax.f32 %v1621, %v1633
        %v1636 = vmax.f32 %v1622, %v1634
        %1637 = vrot.lane.b32.xlu0 %v1163, 32
        %v1638 = vpop.permute.xlu0 %1637
        %1639 = vrot.lane.b32.xlu0 %v1164, 32
        %v1640 = vpop.permute.xlu0 %1639
        %1643 = vrot.lane.b32.xlu0 %v1399, 64
        %v1644 = vpop.permute.xlu0 %1643
        %1645 = vrot.lane.b32.xlu0 %v1400, 64
        %v1646 = vpop.permute.xlu0 %1645
        %1651 = vrot.lane.b32.xlu0 %v1635, 96
        %v1652 = vpop.permute.xlu0 %1651
        %1653 = vrot.lane.b32.xlu0 %v1636, 96
        %v1654 = vpop.permute.xlu0 %1653
        %v1657 = vsel %vm670, %v927, %v1638
        %v1658 = vsel %vm670, %v928, %v1640
        %vm1659 = vcmask 523264
        %v1660 = vsel %vm1659, %v1657, %v1644
        %v1661 = vsel %vm1659, %v1658, %v1646
        %vm1662 = vcmask 785408
        %v1663 = vsel %vm1662, %v1660, %v1652
        %v1664 = vsel %vm1662, %v1661, %v1654
        %v1665 = vld [vmem:[%s6] sm:$0xff]
        %v1666 = vld [vmem:[%s6 + $0x8] sm:$0xff]
        %v1667 = vld [vmem:[%s6 + $0x10] sm:$0xff]
        %v1668 = vld [vmem:[%s6 + $0x18] sm:$0xff]
        %v1669 = vld [vmem:[%s6 + $0x20] sm:$0xff]
        %v1670 = vld [vmem:[%s6 + $0x28] sm:$0xff]
        %v1671 = vld [vmem:[%s6 + $0x30] sm:$0xff]
        %v1672 = vld [vmem:[%s6 + $0x38] sm:$0xff]
        %v1673 = vld [vmem:[%s6 + $0x40] sm:$0xff]
        %v1674 = vld [vmem:[%s6 + $0x48] sm:$0xff]
        %v1675 = vld [vmem:[%s6 + $0x50] sm:$0xff]
        %v1676 = vld [vmem:[%s6 + $0x58] sm:$0xff]
        %v1677 = vld [vmem:[%s6 + $0x60] sm:$0xff]
        %v1678 = vld [vmem:[%s6 + $0x68] sm:$0xff]
        %v1679 = vld [vmem:[%s6 + $0x70] sm:$0xff]
        %v1680 = vld [vmem:[%s6 + $0x78] sm:$0xff]
        %1681 = vmatprep.subr.mxu0 0.0
        %1682 = vmatpush1.msra.mxu0 %v1680
        %1683 = vmatprep.subr.mxu0 0.0
        %1684 = vmatpush1.msra.mxu0 %v1679
        %1685 = vmatprep.subr.mxu0 0.0
        %1686 = vmatpush1.msra.mxu0 %v1678
        %1687 = vmatprep.subr.mxu0 0.0
        %1688 = vmatpush1.msra.mxu0 %v1677
        %1689 = vmatprep.subr.mxu0 0.0
        %1690 = vmatpush1.msra.mxu0 %v1676
        %1691 = vmatprep.subr.mxu0 0.0
        %1692 = vmatpush1.msra.mxu0 %v1675
        %1693 = vmatprep.subr.mxu0 0.0
        %1694 = vmatpush1.msra.mxu0 %v1674
        %1695 = vmatprep.subr.mxu0 0.0
        %1696 = vmatpush1.msra.mxu0 %v1673
        %1697 = vmatprep.subr.mxu0 0.0
        %1698 = vmatpush1.msra.mxu0 %v1672
        %1699 = vmatprep.subr.mxu0 0.0
        %1700 = vmatpush1.msra.mxu0 %v1671
        %1701 = vmatprep.subr.mxu0 0.0
        %1702 = vmatpush1.msra.mxu0 %v1670
        %1703 = vmatprep.subr.mxu0 0.0
        %1704 = vmatpush1.msra.mxu0 %v1669
        %1705 = vmatprep.subr.mxu0 0.0
        %1706 = vmatpush1.msra.mxu0 %v1668
        %1707 = vmatprep.subr.mxu0 0.0
        %1708 = vmatpush1.msra.mxu0 %v1667
        %1709 = vmatprep.subr.mxu0 0.0
        %1710 = vmatpush1.msra.mxu0 %v1666
        %1711 = vmatprep.subr.mxu0 0.0
        %1712 = vmatpush1.msra.mxu0 %v1665
        %1713 = vmatprep.subr.mxu0 0.0
        %1714 = vmatpush2.msra.mxu0 0.0
        %1715 = vmatprep.subr.mxu0 0.0
        %1716 = vmatpush2.msra.mxu0 0.0
        %1717 = vmatprep.subr.mxu0 0.0
        %1718 = vmatpush2.msra.mxu0 0.0
        %1719 = vmatprep.subr.mxu0 0.0
        %1720 = vmatpush2.msra.mxu0 0.0
        %1721 = vmatprep.subr.mxu0 0.0
        %1722 = vmatpush2.msra.mxu0 0.0
        %1723 = vmatprep.subr.mxu0 0.0
        %1724 = vmatpush2.msra.mxu0 0.0
        %1725 = vmatprep.subr.mxu0 0.0
        %1726 = vmatpush2.msra.mxu0 0.0
        %1727 = vmatprep.subr.mxu0 0.0
        %1728 = vmatpush2.msra.mxu0 0.0
        %1729 = vmatprep.subr.mxu0 0.0
        %1730 = vmatpush2.msra.mxu0 0.0
        %1731 = vmatprep.subr.mxu0 0.0
        %1732 = vmatpush2.msra.mxu0 0.0
        %1733 = vmatprep.subr.mxu0 0.0
        %1734 = vmatpush2.msra.mxu0 0.0
        %1735 = vmatprep.subr.mxu0 0.0
        %1736 = vmatpush2.msra.mxu0 0.0
        %1737 = vmatprep.subr.mxu0 0.0
        %1738 = vmatpush2.msra.mxu0 0.0
        %1739 = vmatprep.subr.mxu0 0.0
        %1740 = vmatpush2.msra.mxu0 0.0
        %1741 = vmatprep.subr.mxu0 0.0
        %1742 = vmatpush2.msra.mxu0 0.0
        %1743 = vmatprep.subr.mxu0 0.0
        %1744 = vmatpush2.msra.mxu0 0.0
        %1745 = vmatprep.mubr.f32.mxu0 0.0
        %1746 = vmatmul.mubr.f32.gmra.mxu0 %v1663
        %v1747 = vpop.f32.mrf.mxu0
        %v1748 = vadd.f32 0.0, %v1747
        %v1749 = vpop.f32.mrf.mxu0
        %1750 = vmatprep.mubr.f32.mxu0 0.0
        %1751 = vmatmul.mubr.f32.gmra.mxu0 %v1664
        %v1752 = vpop.f32.mrf.mxu0
        %v1753 = vadd.f32 0.0, %v1752
        %v1754 = vpop.f32.mrf.mxu0
        %1755 = vdwg.mxu0
        %vm1756 = vcmp.ge.f32.partialorder %v1748, 0.0
        %vm1757 = vcmp.ge.f32.partialorder %v1753, 0.0
        %v1758 = vmul.f32 %v1748, 0.2
        %v1759 = vmul.f32 %v1753, 0.2
        %v1760 = vsel %vm1756, %v1748, %v1758
        %v1761 = vsel %vm1757, %v1753, %v1759
        %v1762 = vld [vmem:[%s7] sm:$0x1]
        %v1764 = vlaneseq
        %v1765 = vshrl.u32 %v1764, 7
        %v1766 = vsub.s32 0, %v1765
        %v1767 = vrot.slane %v1762, %v1766
        %v1769 = vmul.f32 %v1760, %v1767
        %v1770 = vmul.f32 %v1761, %v1767
        %v1771 = vld [vmem:[%s8] sm:$0x1]
        %v1773 = vlaneseq
        %v1774 = vshrl.u32 %v1773, 7
        %v1775 = vsub.s32 0, %v1774
        %v1776 = vrot.slane %v1771, %v1775
        %v1778 = vadd.f32 %v1769, %v1776
        %v1779 = vadd.f32 %v1770, %v1776
        %1780 = vst.msk [vmem:[%s408] sm:$0xff] %vm670, %v1778
        %1781 = vst.msk [vmem:[%s408 + $0x8] sm:$0xff] %vm670, %v1779
        %s1782 = sand.u32 %s236, 1
        %s1783 = scalar_lea.sflag [#allocation5], %s1782
        %s1784 = sand.u32 %s236, 1
        %s1785 = smul.addr %s1784, 16
        %s1786 = scalar_lea.vmem [#allocation8], %s1785
        %p1787 = scmp.lt.s32.totalorder %s29, 1
        %s1788 = scalar_select %p1787, %s29, 1
        %s1789 = smul.addr %s1788, 2
        %s1790 = smul.addr %s1789, 8
        %s1791 = scalar_lea.vmem %s10, %s1790
        // Predicated region
        $region65: #{tpu_custom_call.1} parent=55 // pred_check
          %p1792 = pneg %p246
        $region66: #{tpu_custom_call.1} parent=55 // pred_check_branch
          %1794 = sbr.rel (%p1792) target = $region68
        $region67: #{tpu_custom_call.1} parent=55 // pred_region
          %s1796 = ssub.s32 256, 256
          %1797 = vsyncadd %s1783, %s1796
          %s1798 = smul.addr %s29, 2
          %s1799 = smul.addr %s1798, 128
          %s1800 = scalar_lea.hbm %s9, %s1799
          %s1801 = sshll.u32 %s1786, 4
          %s1802 = int_to_ptr.vmem [resolvable:$true] %s1801
          %1807 = dma.vmem_to_hbm [thread:$0]  %s1802, 256, %s1800, %s1783, 128, 128, 8
        $region68: #{tpu_custom_call.1} parent=55 // pred_fallthru
          _
        // Predicated region
        $region69: #{tpu_custom_call.1} parent=55 // pred_check
          %p1808 = pneg %p272
        $region70: #{tpu_custom_call.1} parent=55 // pred_check_branch
          %1810 = sbr.rel (%p1808) target = $region72
        $region71: #{tpu_custom_call.1} parent=55 // pred_region
          _
        $region72: #{tpu_custom_call.1} parent=55 // pred_fallthru
          _
      $region56: #{tpu_custom_call.1} parent=5 // pred_fallthru
        _
      %p1811 = scmp.le.s32.totalorder 2, %s24
      // Predicated region
      $region73: #{tpu_custom_call.1} parent=5 // pred_check
        %p1812 = pneg %p1811
      $region74: #{tpu_custom_call.1} parent=5 // pred_check_branch
        %1814 = sbr.rel (%p1812) target = $region76
      $region75: #{tpu_custom_call.1} parent=5 // pred_region
        %s1815 = ssub.s32 %s24, 2
        // Predicated region
        $region77: #{tpu_custom_call.1} parent=75 // pred_check
          %p1816 = pneg %p252
        $region78: #{tpu_custom_call.1} parent=75 // pred_check_branch
          %1818 = sbr.rel (%p1816) target = $region80
        $region79: #{tpu_custom_call.1} parent=75 // pred_region
          %s1819 = sand.u32 %s237, 1
          %s1820 = scalar_lea.sflag [#allocation5], %s1819
          %s1821 = sand.u32 %s237, 1
          %s1822 = smul.addr %s1821, 16
          %s1823 = scalar_lea.vmem [#allocation8], %s1822
          %1824 = dma.done %s1820, 256
        $region80: #{tpu_custom_call.1} parent=75 // pred_fallthru
          _
        // Predicated region
        $region81: #{tpu_custom_call.1} parent=75 // pred_check
          %p1825 = pneg %p278
        $region82: #{tpu_custom_call.1} parent=75 // pred_check_branch
          %1827 = sbr.rel (%p1825) target = $region84
        $region83: #{tpu_custom_call.1} parent=75 // pred_region
          %p1828 = scmp.lt.s32.totalorder %s30, 1
          %s1829 = scalar_select %p1828, %s30, 1
          %s1830 = smul.addr %s1829, 2
          %s1831 = smul.addr %s1830, 8
          %s1832 = scalar_lea.vmem %s10, %s1831
        $region84: #{tpu_custom_call.1} parent=75 // pred_fallthru
          _
      $region76: #{tpu_custom_call.1} parent=5 // pred_fallthru
        _
    $region6: #{tpu_custom_call.1} parent=1 // loop_footer
      %s28 = sadd.s32 1, %s24
    $region7: #{tpu_custom_call.1} parent=1 // loop_footer_branch
      %23 = sbr.rel target = $region3
    $region8: #{tpu_custom_call.1} parent=1 // loop_exit
      _
    %1833 = vsyncpa [#allocation4], 1
    %s1834 = scalar_lea.sflag [#allocation4], 1
    %1835 = vsyncpa %s1834, 1
    %1836 = vsyncpa [#allocation7], 1
    %1837 = vsyncpa [#allocation5], 1
    %s1838 = scalar_lea.sflag [#allocation5], 1
    %1839 = vsyncpa %s1838, 1

</llo_original>
